<compile_context>
chip_gen: v5e
topology: v5e:2x2
jax: 0.10.0
libtpu: 0.0.40
codegen_flags: <defaults>
</compile_context>

<pallas_src>
import functools

import jax
import jax.numpy as jnp
from jax.experimental import pallas as pl
from jax.experimental.pallas import tpu as pltpu


# ----------------------------------------------------------------------------
# Fused kernel: embedding -> multi-head self-attention -> flatten -> MLP head
# One grid step per `batch_per_step` batch elements.
# ----------------------------------------------------------------------------
def _attention_cnn_kernel(x_ref, w_cat_ref, emb_sel_ref,
                          wq_ref, bq_ref, wk_ref, bk_ref, wv_ref, bv_ref,
                          bmask_ref, wo_ref, bfmask_ref, seg_ref,
                          w1_ref, b1_ref, w2_ref, b2_ref, w3_ref, b3_ref,
                          o_ref, *, num_heads, batch_per_step):
    E = wk_ref.shape[0]           # attention embed dim (= input_size)
    Bs = batch_per_step

    # ---- Embedding on the MXU: enc_b = W_cat @ (tile(x_b) * block-diag selector)
    #      W_cat[l, e*S+s] = w_emb[e, l, s];  selector[e*S+s, e'] = (e == e')
    sel = emb_sel_ref[...]                                     # (S*E, E) constant 0/1
    w_cat = w_cat_ref[...]                                     # (L, S*E)
    enc_parts = []
    for i in range(Bs):                                        # static unroll (Bs known at trace)
        xb = x_ref[i]                                          # (S, E)
        xdiag = jnp.tile(xb, (E, 1)) * sel                     # (S*E, E) block-diagonal data
        enc_parts.append(jnp.dot(w_cat, xdiag, preferred_element_type=jnp.float32))
    enc = enc_parts[0] if Bs == 1 else jnp.concatenate(enc_parts, axis=0)   # (Bs*L, E)

    # ---- Q/K/V projections (no lane slicing: Q weights are head-masked & pre-scaled)
    k = jnp.dot(enc, wk_ref[...], preferred_element_type=jnp.float32) + bk_ref[...]   # (Bs*L, E)
    v = jnp.dot(enc, wv_ref[...], preferred_element_type=jnp.float32) + bv_ref[...]   # (Bs*L, E)
    bmask = bmask_ref[...]                                     # (Bs*L, Bs*L) 0 / -1e30

    proj = None
    for h in range(num_heads):                                 # static unroll (H=2)
        q_h = (jnp.dot(enc, wq_ref[h], preferred_element_type=jnp.float32)
               + bq_ref[h])                                    # (Bs*L, E), head-masked & scaled
        s = jax.lax.dot_general(q_h, k, (((1,), (1,)), ((), ())),
                                preferred_element_type=jnp.float32) + bmask            # (Bs*L, Bs*L)
        p = jnp.exp(s - jnp.max(s, axis=-1, keepdims=True))
        attn = p * pl.reciprocal(jnp.sum(p, axis=-1, keepdims=True), approx=False)
        ctx = jnp.dot(attn, v, preferred_element_type=jnp.float32)                     # (Bs*L, E)
        # head-masked out_proj rows, pre-expanded to (E, L*E): lands lane-dense.
        term = jnp.dot(ctx, wo_ref[h], preferred_element_type=jnp.float32)             # (Bs*L, L*E)
        proj = term if proj is None else proj + term

    # ---- Flatten(mha): select column-block c//E == token, segment-sum over tokens
    #      via one vmul (constant mask) and one tiny MXU dot (constant segment matrix).
    flat = jnp.dot(seg_ref[...], proj * bfmask_ref[...],
                   preferred_element_type=jnp.float32)         # (Bs, L*E) lane-dense

    # ---- MLP head (out_proj bias already folded into b1; fc3 padded to 128 lanes)
    h1 = jnp.maximum(jnp.dot(flat, w1_ref[...], preferred_element_type=jnp.float32)
                     + b1_ref[...], 0.0)
    h2 = jnp.maximum(jnp.dot(h1, w2_ref[...], preferred_element_type=jnp.float32)
                     + b2_ref[...], 0.0)
    o_ref[...] = jnp.dot(h2, w3_ref[...], preferred_element_type=jnp.float32) + b3_ref[...]


@functools.partial(jax.jit, static_argnames=("num_heads", "batch_per_step"))
def attention_cnn_forward(x, params, num_heads, batch_per_step=None):
    B, S, E = x.shape                      # E = input_size = attention embed dim
    D = params["w_emb"].shape[1]           # embedding_dim = number of attention tokens (L)
    H1 = params["w1"].shape[0]
    H2 = params["w2"].shape[0]
    C = params["w3"].shape[0]
    Dh = E // num_heads
    scale = float(Dh) ** -0.5
    # batch elements per grid step: B (single step) on v5e/v6e, use B//2 on v7x
    # so each TensorCore gets one "parallel" step.
    Bs = B if batch_per_step is None else batch_per_step
    assert B % Bs == 0, (B, Bs)
    OUTP = ((C + 127) // 128) * 128        # lane-dense padded output width
    f32 = jnp.float32

    # ---- wrapper-side layout plumbing (pure XLA, fused under jit) -------------
    # embedding: dense (L, S*E) weight + constant block-diag selector
    w_cat = params["w_emb"].transpose(1, 0, 2).reshape(D, E * S)      # [l, e*S+s] = w_emb[e,l,s]
    emb_sel = jnp.repeat(jnp.eye(E, dtype=f32), S, axis=0)            # (S*E, E)

    # attention projections; Q weights head-masked + pre-scaled (no in-kernel slicing)
    w_in, b_in = params["w_in"], params["b_in"]
    head_of = jnp.arange(E) // Dh
    wq_t, bq = w_in[0:E].T * scale, b_in[:, 0:E] * scale
    wq_h = jnp.stack([jnp.where(head_of[None, :] == h, wq_t, 0.0) for h in range(num_heads)])
    bq_h = jnp.stack([jnp.where(head_of[None, :] == h, bq, 0.0) for h in range(num_heads)])
    wk_t, bk = w_in[E:2 * E].T, b_in[:, E:2 * E]
    wv_t, bv = w_in[2 * E:3 * E].T, b_in[:, 2 * E:3 * E]

    # out_proj fused with Flatten: head-masked rows, tiled to (E, L*E)
    wo_t = params["w_out"].T
    wo_h = jnp.stack([jnp.tile(jnp.where(head_of[:, None] == h, wo_t, 0.0), (1, D))
                      for h in range(num_heads)])                      # (H, E, D*E)

    # constant masks: block-diagonal batch score mask, flatten selector, segment matrix
    blk = jnp.arange(Bs * D) // D
    bmask = jnp.where(blk[:, None] == blk[None, :], 0.0, -1e30).astype(f32)          # (Bs*L, Bs*L)
    row_l = jnp.arange(Bs * D) % D
    bfmask = (row_l[:, None] == (jnp.arange(D * E)[None, :] // E)).astype(f32)       # (Bs*L, L*E)
    seg = (jnp.arange(Bs)[:, None] == (jnp.arange(Bs * D)[None, :] // D)).astype(f32)  # (Bs, Bs*L)

    # MLP: fold out_proj bias (post-flatten) into fc1 bias; pad fc3 to 128 lanes
    w1_t = params["w1"].T
    b1_eff = params["b1"] + jnp.tile(params["b_out"], (1, D)) @ w1_t
    w2_t, b2 = params["w2"].T, params["b2"]
    w3_pad = jnp.zeros((H2, OUTP), f32).at[:, :C].set(params["w3"].T)
    b3_pad = jnp.zeros((1, OUTP), f32).at[:, :C].set(params["b3"])

    def const_spec(a):                     # full-array block, constant index -> stays resident
        idx = (0,) * a.ndim
        return pl.BlockSpec(a.shape, lambda i, idx=idx: idx)

    weights = (w_cat, emb_sel, wq_h, bq_h, wk_t, bk, wv_t, bv,
               bmask, wo_h, bfmask, seg, w1_t, b1_eff, w2_t, b2, w3_pad, b3_pad)
    kernel = functools.partial(_attention_cnn_kernel,
                               num_heads=num_heads, batch_per_step=Bs)
    out = pl.pallas_call(
        kernel,
        out_shape=jax.ShapeDtypeStruct((B, OUTP), f32),
        grid=(B // Bs,),
        in_specs=[pl.BlockSpec((Bs, S, E), lambda i: (i, 0, 0))]
                 + [const_spec(w) for w in weights],
        out_specs=pl.BlockSpec((Bs, OUTP), lambda i: (i, 0)),
        compiler_params=pltpu.CompilerParams(dimension_semantics=("parallel",)),
    )(x, *weights)
    return out[:, :C]


# ----------------------------------------------------------------------------
# Pure-JAX reference (numerical check)
# ----------------------------------------------------------------------------
def reference_forward(x, params, num_heads):
    B, S, F = x.shape
    D = params["w_emb"].shape[1]
    E, Dh = F, F // num_heads
    enc = jnp.einsum("bsf,fds->bdf", x, params["w_emb"])
    w_in, b_in = params["w_in"], params["b_in"][0]
    q = enc @ w_in[0:E].T + b_in[0:E]
    k = enc @ w_in[E:2 * E].T + b_in[E:2 * E]
    v = enc @ w_in[2 * E:3 * E].T + b_in[2 * E:3 * E]
    split = lambda t: t.reshape(B, D, num_heads, Dh).transpose(0, 2, 1, 3)
    qh, kh, vh = split(q), split(k), split(v)
    s = jnp.einsum("bhld,bhmd->bhlm", qh, kh) / (Dh ** 0.5)
    a = jax.nn.softmax(s, axis=-1)
    ctx = jnp.einsum("bhlm,bhmd->bhld", a, vh).transpose(0, 2, 1, 3).reshape(B, D, E)
    mha = ctx @ params["w_out"].T + params["b_out"][0]
    flat = mha.reshape(B, -1)
    h1 = jax.nn.relu(flat @ params["w1"].T + params["b1"][0])
    h2 = jax.nn.relu(h1 @ params["w2"].T + params["b2"][0])
    return h2 @ params["w3"].T + params["b3"][0]


if __name__ == "__main__":
    # input_size F=8, embedding_dim D=16, sequences S=12, num_heads H=2, classes C=5, batch B=2
    B, S, F, D, H, C = 2, 12, 8, 16, 2, 5

    key = jax.random.PRNGKey(0)
    ks = jax.random.split(key, 12)
    x = jax.random.normal(ks[0], (B, S, F), jnp.float32)

    params = {
        # encoder: one Linear(S -> D), no bias, per input feature  -> stacked (F, D, S)
        "w_emb": jax.random.normal(ks[1], (F, D, S), jnp.float32) * 0.1,
        # MultiheadAttention in_proj (3E, E) + bias, out_proj (E, E) + bias  (E = F)
        "w_in": jax.random.normal(ks[2], (3 * F, F), jnp.float32) * 0.1,
        "b_in": jax.random.normal(ks[3], (1, 3 * F), jnp.float32) * 0.01,
        "w_out": jax.random.normal(ks[4], (F, F), jnp.float32) * 0.1,
        "b_out": jax.random.normal(ks[5], (1, F), jnp.float32) * 0.01,
        # fc head
        "w1": jax.random.normal(ks[6], (300, D * F), jnp.float32) * 0.05,
        "b1": jax.random.normal(ks[7], (1, 300), jnp.float32) * 0.01,
        "w2": jax.random.normal(ks[8], (100, 300), jnp.float32) * 0.05,
        "b2": jax.random.normal(ks[9], (1, 100), jnp.float32) * 0.01,
        "w3": jax.random.normal(ks[10], (C, 100), jnp.float32) * 0.05,
        "b3": jax.random.normal(ks[11], (1, C), jnp.float32) * 0.01,
    }

    out = attention_cnn_forward(x, params, H)
    out = jax.block_until_ready(out)

    ref = reference_forward(x, params, H)
    assert out.shape == (B, C), out.shape
    assert jnp.allclose(out, ref, atol=2e-3, rtol=2e-3), (out, ref)

    print("KERNEL_OK")
</pallas_src>

<mosaic_0001>
module attributes {stable_mosaic.version = 11 : i64} {
  func.func @_attention_cnn_kernel(%arg0: i32, %arg1: memref<2x12x8xf32, #tpu.memory_space<vmem>>, %arg2: memref<16x96xf32, #tpu.memory_space<vmem>>, %arg3: memref<96x8xf32, #tpu.memory_space<vmem>>, %arg4: memref<2x8x8xf32, #tpu.memory_space<vmem>>, %arg5: memref<2x1x8xf32, #tpu.memory_space<vmem>>, %arg6: memref<8x8xf32, #tpu.memory_space<vmem>>, %arg7: memref<1x8xf32, #tpu.memory_space<vmem>>, %arg8: memref<8x8xf32, #tpu.memory_space<vmem>>, %arg9: memref<1x8xf32, #tpu.memory_space<vmem>>, %arg10: memref<32x32xf32, #tpu.memory_space<vmem>>, %arg11: memref<2x8x128xf32, #tpu.memory_space<vmem>>, %arg12: memref<32x128xf32, #tpu.memory_space<vmem>>, %arg13: memref<2x32xf32, #tpu.memory_space<vmem>>, %arg14: memref<128x300xf32, #tpu.memory_space<vmem>>, %arg15: memref<1x300xf32, #tpu.memory_space<vmem>>, %arg16: memref<300x100xf32, #tpu.memory_space<vmem>>, %arg17: memref<1x100xf32, #tpu.memory_space<vmem>>, %arg18: memref<100x128xf32, #tpu.memory_space<vmem>>, %arg19: memref<1x128xf32, #tpu.memory_space<vmem>>, %arg20: memref<2x128xf32, #tpu.memory_space<vmem>>) attributes {dimension_semantics = [#tpu.dimension_semantics<parallel>], iteration_bounds = array<i64: 1>, scalar_prefetch = 0 : i64, scratch_operands = 0 : i64, tpu.core_type = #tpu.core_type<tc>, window_params = [{transform_indices = @transform_0, window_bounds = array<i64: 2, 12, 8>}, {pipeline_mode = #tpu.pipeline_mode<synchronous>, transform_indices = @transform_1, window_bounds = array<i64: 16, 96>}, {pipeline_mode = #tpu.pipeline_mode<synchronous>, transform_indices = @transform_2, window_bounds = array<i64: 96, 8>}, {pipeline_mode = #tpu.pipeline_mode<synchronous>, transform_indices = @transform_3, window_bounds = array<i64: 2, 8, 8>}, {pipeline_mode = #tpu.pipeline_mode<synchronous>, transform_indices = @transform_4, window_bounds = array<i64: 2, 1, 8>}, {pipeline_mode = #tpu.pipeline_mode<synchronous>, transform_indices = @transform_5, window_bounds = array<i64: 8, 8>}, {pipeline_mode = #tpu.pipeline_mode<synchronous>, transform_indices = @transform_6, window_bounds = array<i64: 1, 8>}, {pipeline_mode = #tpu.pipeline_mode<synchronous>, transform_indices = @transform_7, window_bounds = array<i64: 8, 8>}, {pipeline_mode = #tpu.pipeline_mode<synchronous>, transform_indices = @transform_8, window_bounds = array<i64: 1, 8>}, {pipeline_mode = #tpu.pipeline_mode<synchronous>, transform_indices = @transform_9, window_bounds = array<i64: 32, 32>}, {pipeline_mode = #tpu.pipeline_mode<synchronous>, transform_indices = @transform_10, window_bounds = array<i64: 2, 8, 128>}, {pipeline_mode = #tpu.pipeline_mode<synchronous>, transform_indices = @transform_11, window_bounds = array<i64: 32, 128>}, {pipeline_mode = #tpu.pipeline_mode<synchronous>, transform_indices = @transform_12, window_bounds = array<i64: 2, 32>}, {pipeline_mode = #tpu.pipeline_mode<synchronous>, transform_indices = @transform_13, window_bounds = array<i64: 128, 300>}, {pipeline_mode = #tpu.pipeline_mode<synchronous>, transform_indices = @transform_14, window_bounds = array<i64: 1, 300>}, {pipeline_mode = #tpu.pipeline_mode<synchronous>, transform_indices = @transform_15, window_bounds = array<i64: 300, 100>}, {pipeline_mode = #tpu.pipeline_mode<synchronous>, transform_indices = @transform_16, window_bounds = array<i64: 1, 100>}, {pipeline_mode = #tpu.pipeline_mode<synchronous>, transform_indices = @transform_17, window_bounds = array<i64: 100, 128>}, {pipeline_mode = #tpu.pipeline_mode<synchronous>, transform_indices = @transform_18, window_bounds = array<i64: 1, 128>}, {transform_indices = @transform_19, window_bounds = array<i64: 2, 128>}]} {
    %c0 = arith.constant 0 : index
    %c0_0 = arith.constant 0 : index
    %0 = vector.load %arg3[%c0, %c0_0] : memref<96x8xf32, #tpu.memory_space<vmem>>, vector<96x8xf32>
    %c0_1 = arith.constant 0 : index
    %c0_2 = arith.constant 0 : index
    %1 = vector.load %arg2[%c0_1, %c0_2] : memref<16x96xf32, #tpu.memory_space<vmem>>, vector<16x96xf32>
    %c0_3 = arith.constant 0 : index
    %c0_4 = arith.constant 0 : index
    %c0_5 = arith.constant 0 : index
    %2 = vector.load %arg1[%c0_3, %c0_4, %c0_5] : memref<2x12x8xf32, #tpu.memory_space<vmem>>, vector<1x12x8xf32>
    %3 = vector.shape_cast %2 : vector<1x12x8xf32> to vector<12x8xf32>
    %4 = tpu.concatenate %3, %3, %3, %3, %3, %3, %3, %3 in 0 : vector<12x8xf32>, vector<12x8xf32>, vector<12x8xf32>, vector<12x8xf32>, vector<12x8xf32>, vector<12x8xf32>, vector<12x8xf32>, vector<12x8xf32> -> vector<96x8xf32>
    %5 = arith.mulf %4, %0 : vector<96x8xf32>
    %cst = arith.constant dense<0.000000e+00> : vector<16x8xf32>
    %6 = tpu.matmul %1, %5, %cst {dimension_numbers = #tpu.dot_dimension_numbers<[1], [0], [0], [1], [0, 0, 1, 1], [], []>} : vector<16x96xf32>, vector<96x8xf32>, vector<16x8xf32> -> vector<16x8xf32>
    %c1 = arith.constant 1 : index
    %c0_6 = arith.constant 0 : index
    %c0_7 = arith.constant 0 : index
    %7 = vector.load %arg1[%c1, %c0_6, %c0_7] : memref<2x12x8xf32, #tpu.memory_space<vmem>>, vector<1x12x8xf32>
    %8 = vector.shape_cast %7 : vector<1x12x8xf32> to vector<12x8xf32>
    %9 = tpu.concatenate %8, %8, %8, %8, %8, %8, %8, %8 in 0 : vector<12x8xf32>, vector<12x8xf32>, vector<12x8xf32>, vector<12x8xf32>, vector<12x8xf32>, vector<12x8xf32>, vector<12x8xf32>, vector<12x8xf32> -> vector<96x8xf32>
    %10 = arith.mulf %9, %0 : vector<96x8xf32>
    %cst_8 = arith.constant dense<0.000000e+00> : vector<16x8xf32>
    %11 = tpu.matmul %1, %10, %cst_8 {dimension_numbers = #tpu.dot_dimension_numbers<[1], [0], [0], [1], [0, 0, 1, 1], [], []>} : vector<16x96xf32>, vector<96x8xf32>, vector<16x8xf32> -> vector<16x8xf32>
    %12 = tpu.concatenate %6, %11 in 0 : vector<16x8xf32>, vector<16x8xf32> -> vector<32x8xf32>
    %c0_9 = arith.constant 0 : index
    %c0_10 = arith.constant 0 : index
    %13 = vector.load %arg6[%c0_9, %c0_10] : memref<8x8xf32, #tpu.memory_space<vmem>>, vector<8x8xf32>
    %cst_11 = arith.constant dense<0.000000e+00> : vector<32x8xf32>
    %14 = tpu.matmul %12, %13, %cst_11 {dimension_numbers = #tpu.dot_dimension_numbers<[1], [0], [0], [1], [0, 0, 1, 1], [], []>} : vector<32x8xf32>, vector<8x8xf32>, vector<32x8xf32> -> vector<32x8xf32>
    %c0_12 = arith.constant 0 : index
    %c0_13 = arith.constant 0 : index
    %15 = vector.load %arg7[%c0_12, %c0_13] : memref<1x8xf32, #tpu.memory_space<vmem>>, vector<1x8xf32>
    %16 = vector.broadcast %15 : vector<1x8xf32> to vector<32x8xf32>
    %17 = arith.addf %14, %16 : vector<32x8xf32>
    %c0_14 = arith.constant 0 : index
    %c0_15 = arith.constant 0 : index
    %18 = vector.load %arg8[%c0_14, %c0_15] : memref<8x8xf32, #tpu.memory_space<vmem>>, vector<8x8xf32>
    %cst_16 = arith.constant dense<0.000000e+00> : vector<32x8xf32>
    %19 = tpu.matmul %12, %18, %cst_16 {dimension_numbers = #tpu.dot_dimension_numbers<[1], [0], [0], [1], [0, 0, 1, 1], [], []>} : vector<32x8xf32>, vector<8x8xf32>, vector<32x8xf32> -> vector<32x8xf32>
    %c0_17 = arith.constant 0 : index
    %c0_18 = arith.constant 0 : index
    %20 = vector.load %arg9[%c0_17, %c0_18] : memref<1x8xf32, #tpu.memory_space<vmem>>, vector<1x8xf32>
    %21 = vector.broadcast %20 : vector<1x8xf32> to vector<32x8xf32>
    %22 = arith.addf %19, %21 : vector<32x8xf32>
    %c0_19 = arith.constant 0 : index
    %c0_20 = arith.constant 0 : index
    %23 = vector.load %arg10[%c0_19, %c0_20] : memref<32x32xf32, #tpu.memory_space<vmem>>, vector<32x32xf32>
    %c0_21 = arith.constant 0 : index
    %c0_22 = arith.constant 0 : index
    %c0_23 = arith.constant 0 : index
    %24 = vector.load %arg4[%c0_21, %c0_22, %c0_23] : memref<2x8x8xf32, #tpu.memory_space<vmem>>, vector<1x8x8xf32>
    %25 = vector.shape_cast %24 : vector<1x8x8xf32> to vector<8x8xf32>
    %cst_24 = arith.constant dense<0.000000e+00> : vector<32x8xf32>
    %26 = tpu.matmul %12, %25, %cst_24 {dimension_numbers = #tpu.dot_dimension_numbers<[1], [0], [0], [1], [0, 0, 1, 1], [], []>} : vector<32x8xf32>, vector<8x8xf32>, vector<32x8xf32> -> vector<32x8xf32>
    %c0_25 = arith.constant 0 : index
    %c0_26 = arith.constant 0 : index
    %c0_27 = arith.constant 0 : index
    %27 = vector.load %arg5[%c0_25, %c0_26, %c0_27] : memref<2x1x8xf32, #tpu.memory_space<vmem>>, vector<1x1x8xf32>
    %28 = vector.shape_cast %27 : vector<1x1x8xf32> to vector<1x8xf32>
    %29 = vector.broadcast %28 : vector<1x8xf32> to vector<32x8xf32>
    %30 = arith.addf %26, %29 : vector<32x8xf32>
    %cst_28 = arith.constant dense<0.000000e+00> : vector<32x32xf32>
    %31 = tpu.matmul %30, %17, %cst_28 {dimension_numbers = #tpu.dot_dimension_numbers<[1], [1], [0], [0], [0, 0, 1, 0], [], []>} : vector<32x8xf32>, vector<32x8xf32>, vector<32x32xf32> -> vector<32x32xf32>
    %32 = arith.addf %31, %23 : vector<32x32xf32>
    %cst_29 = arith.constant dense<0xFF800000> : vector<32xf32>
    %33 = vector.multi_reduction <maximumf>, %32, %cst_29 [1] : vector<32x32xf32> to vector<32xf32>
    %34 = vector.shape_cast %33 : vector<32xf32> to vector<32x1xf32>
    %35 = vector.broadcast %34 : vector<32x1xf32> to vector<32x32xf32>
    %36 = arith.subf %32, %35 : vector<32x32xf32>
    %37 = math.exp %36 : vector<32x32xf32>
    %cst_30 = arith.constant dense<0.000000e+00> : vector<32xf32>
    %38 = vector.multi_reduction <add>, %37, %cst_30 [1] : vector<32x32xf32> to vector<32xf32>
    %39 = vector.shape_cast %38 : vector<32xf32> to vector<32x1xf32>
    %40 = tpu.reciprocal %39 : vector<32x1xf32> -> vector<32x1xf32>
    %41 = vector.broadcast %40 : vector<32x1xf32> to vector<32x32xf32>
    %42 = arith.mulf %37, %41 : vector<32x32xf32>
    %cst_31 = arith.constant dense<0.000000e+00> : vector<32x8xf32>
    %43 = tpu.matmul %42, %22, %cst_31 {dimension_numbers = #tpu.dot_dimension_numbers<[1], [0], [0], [1], [0, 0, 1, 1], [], []>} : vector<32x32xf32>, vector<32x8xf32>, vector<32x8xf32> -> vector<32x8xf32>
    %c0_32 = arith.constant 0 : index
    %c0_33 = arith.constant 0 : index
    %c0_34 = arith.constant 0 : index
    %44 = vector.load %arg11[%c0_32, %c0_33, %c0_34] : memref<2x8x128xf32, #tpu.memory_space<vmem>>, vector<1x8x128xf32>
    %45 = vector.shape_cast %44 : vector<1x8x128xf32> to vector<8x128xf32>
    %cst_35 = arith.constant dense<0.000000e+00> : vector<32x128xf32>
    %46 = tpu.matmul %43, %45, %cst_35 {dimension_numbers = #tpu.dot_dimension_numbers<[1], [0], [0], [1], [0, 0, 1, 1], [], []>} : vector<32x8xf32>, vector<8x128xf32>, vector<32x128xf32> -> vector<32x128xf32>
    %c1_36 = arith.constant 1 : index
    %c0_37 = arith.constant 0 : index
    %c0_38 = arith.constant 0 : index
    %47 = vector.load %arg4[%c1_36, %c0_37, %c0_38] : memref<2x8x8xf32, #tpu.memory_space<vmem>>, vector<1x8x8xf32>
    %48 = vector.shape_cast %47 : vector<1x8x8xf32> to vector<8x8xf32>
    %cst_39 = arith.constant dense<0.000000e+00> : vector<32x8xf32>
    %49 = tpu.matmul %12, %48, %cst_39 {dimension_numbers = #tpu.dot_dimension_numbers<[1], [0], [0], [1], [0, 0, 1, 1], [], []>} : vector<32x8xf32>, vector<8x8xf32>, vector<32x8xf32> -> vector<32x8xf32>
    %c1_40 = arith.constant 1 : index
    %c0_41 = arith.constant 0 : index
    %c0_42 = arith.constant 0 : index
    %50 = vector.load %arg5[%c1_40, %c0_41, %c0_42] : memref<2x1x8xf32, #tpu.memory_space<vmem>>, vector<1x1x8xf32>
    %51 = vector.shape_cast %50 : vector<1x1x8xf32> to vector<1x8xf32>
    %52 = vector.broadcast %51 : vector<1x8xf32> to vector<32x8xf32>
    %53 = arith.addf %49, %52 : vector<32x8xf32>
    %cst_43 = arith.constant dense<0.000000e+00> : vector<32x32xf32>
    %54 = tpu.matmul %53, %17, %cst_43 {dimension_numbers = #tpu.dot_dimension_numbers<[1], [1], [0], [0], [0, 0, 1, 0], [], []>} : vector<32x8xf32>, vector<32x8xf32>, vector<32x32xf32> -> vector<32x32xf32>
    %55 = arith.addf %54, %23 : vector<32x32xf32>
    %cst_44 = arith.constant dense<0xFF800000> : vector<32xf32>
    %56 = vector.multi_reduction <maximumf>, %55, %cst_44 [1] : vector<32x32xf32> to vector<32xf32>
    %57 = vector.shape_cast %56 : vector<32xf32> to vector<32x1xf32>
    %58 = vector.broadcast %57 : vector<32x1xf32> to vector<32x32xf32>
    %59 = arith.subf %55, %58 : vector<32x32xf32>
    %60 = math.exp %59 : vector<32x32xf32>
    %cst_45 = arith.constant dense<0.000000e+00> : vector<32xf32>
    %61 = vector.multi_reduction <add>, %60, %cst_45 [1] : vector<32x32xf32> to vector<32xf32>
    %62 = vector.shape_cast %61 : vector<32xf32> to vector<32x1xf32>
    %63 = tpu.reciprocal %62 : vector<32x1xf32> -> vector<32x1xf32>
    %64 = vector.broadcast %63 : vector<32x1xf32> to vector<32x32xf32>
    %65 = arith.mulf %60, %64 : vector<32x32xf32>
    %cst_46 = arith.constant dense<0.000000e+00> : vector<32x8xf32>
    %66 = tpu.matmul %65, %22, %cst_46 {dimension_numbers = #tpu.dot_dimension_numbers<[1], [0], [0], [1], [0, 0, 1, 1], [], []>} : vector<32x32xf32>, vector<32x8xf32>, vector<32x8xf32> -> vector<32x8xf32>
    %c1_47 = arith.constant 1 : index
    %c0_48 = arith.constant 0 : index
    %c0_49 = arith.constant 0 : index
    %67 = vector.load %arg11[%c1_47, %c0_48, %c0_49] : memref<2x8x128xf32, #tpu.memory_space<vmem>>, vector<1x8x128xf32>
    %68 = vector.shape_cast %67 : vector<1x8x128xf32> to vector<8x128xf32>
    %cst_50 = arith.constant dense<0.000000e+00> : vector<32x128xf32>
    %69 = tpu.matmul %66, %68, %cst_50 {dimension_numbers = #tpu.dot_dimension_numbers<[1], [0], [0], [1], [0, 0, 1, 1], [], []>} : vector<32x8xf32>, vector<8x128xf32>, vector<32x128xf32> -> vector<32x128xf32>
    %70 = arith.addf %46, %69 : vector<32x128xf32>
    %c0_51 = arith.constant 0 : index
    %c0_52 = arith.constant 0 : index
    %71 = vector.load %arg13[%c0_51, %c0_52] : memref<2x32xf32, #tpu.memory_space<vmem>>, vector<2x32xf32>
    %c0_53 = arith.constant 0 : index
    %c0_54 = arith.constant 0 : index
    %72 = vector.load %arg12[%c0_53, %c0_54] : memref<32x128xf32, #tpu.memory_space<vmem>>, vector<32x128xf32>
    %73 = arith.mulf %70, %72 : vector<32x128xf32>
    %cst_55 = arith.constant dense<0.000000e+00> : vector<2x128xf32>
    %74 = tpu.matmul %71, %73, %cst_55 {dimension_numbers = #tpu.dot_dimension_numbers<[1], [0], [0], [1], [0, 0, 1, 1], [], []>} : vector<2x32xf32>, vector<32x128xf32>, vector<2x128xf32> -> vector<2x128xf32>
    %c0_56 = arith.constant 0 : index
    %c0_57 = arith.constant 0 : index
    %75 = vector.load %arg14[%c0_56, %c0_57] : memref<128x300xf32, #tpu.memory_space<vmem>>, vector<128x300xf32>
    %cst_58 = arith.constant dense<0.000000e+00> : vector<2x300xf32>
    %76 = tpu.matmul %74, %75, %cst_58 {dimension_numbers = #tpu.dot_dimension_numbers<[1], [0], [0], [1], [0, 0, 1, 1], [], []>} : vector<2x128xf32>, vector<128x300xf32>, vector<2x300xf32> -> vector<2x300xf32>
    %c0_59 = arith.constant 0 : index
    %c0_60 = arith.constant 0 : index
    %77 = vector.load %arg15[%c0_59, %c0_60] : memref<1x300xf32, #tpu.memory_space<vmem>>, vector<1x300xf32>
    %78 = vector.broadcast %77 : vector<1x300xf32> to vector<2x300xf32>
    %79 = arith.addf %76, %78 : vector<2x300xf32>
    %cst_61 = arith.constant 0.000000e+00 : f32
    %80 = vector.broadcast %cst_61 : f32 to vector<2x300xf32>
    %81 = arith.maximumf %79, %80 : vector<2x300xf32>
    %c0_62 = arith.constant 0 : index
    %c0_63 = arith.constant 0 : index
    %82 = vector.load %arg16[%c0_62, %c0_63] : memref<300x100xf32, #tpu.memory_space<vmem>>, vector<300x100xf32>
    %cst_64 = arith.constant dense<0.000000e+00> : vector<2x100xf32>
    %83 = tpu.matmul %81, %82, %cst_64 {dimension_numbers = #tpu.dot_dimension_numbers<[1], [0], [0], [1], [0, 0, 1, 1], [], []>} : vector<2x300xf32>, vector<300x100xf32>, vector<2x100xf32> -> vector<2x100xf32>
    %c0_65 = arith.constant 0 : index
    %c0_66 = arith.constant 0 : index
    %84 = vector.load %arg17[%c0_65, %c0_66] : memref<1x100xf32, #tpu.memory_space<vmem>>, vector<1x100xf32>
    %85 = vector.broadcast %84 : vector<1x100xf32> to vector<2x100xf32>
    %86 = arith.addf %83, %85 : vector<2x100xf32>
    %cst_67 = arith.constant 0.000000e+00 : f32
    %87 = vector.broadcast %cst_67 : f32 to vector<2x100xf32>
    %88 = arith.maximumf %86, %87 : vector<2x100xf32>
    %c0_68 = arith.constant 0 : index
    %c0_69 = arith.constant 0 : index
    %89 = vector.load %arg18[%c0_68, %c0_69] : memref<100x128xf32, #tpu.memory_space<vmem>>, vector<100x128xf32>
    %cst_70 = arith.constant dense<0.000000e+00> : vector<2x128xf32>
    %90 = tpu.matmul %88, %89, %cst_70 {dimension_numbers = #tpu.dot_dimension_numbers<[1], [0], [0], [1], [0, 0, 1, 1], [], []>} : vector<2x100xf32>, vector<100x128xf32>, vector<2x128xf32> -> vector<2x128xf32>
    %c0_71 = arith.constant 0 : index
    %c0_72 = arith.constant 0 : index
    %91 = vector.load %arg19[%c0_71, %c0_72] : memref<1x128xf32, #tpu.memory_space<vmem>>, vector<1x128xf32>
    %92 = vector.broadcast %91 : vector<1x128xf32> to vector<2x128xf32>
    %93 = arith.addf %90, %92 : vector<2x128xf32>
    %c0_73 = arith.constant 0 : index
    %c0_74 = arith.constant 0 : index
    %94 = vector.load %arg20[%c0_73, %c0_74] : memref<2x128xf32, #tpu.memory_space<vmem>>, vector<2x128xf32>
    tpu.vector_store %arg20[%c0_73, %c0_74], %93 {strides = array<i32>} : memref<2x128xf32, #tpu.memory_space<vmem>>, vector<2x128xf32>,
    return
  }
  func.func @transform_0(%arg0: i32) -> (i32, i32, i32) {
    %c0_i32 = arith.constant 0 : i32
    %c0_i32_0 = arith.constant 0 : i32
    %c0_i32_1 = arith.constant 0 : i32
    return %arg0, %c0_i32, %c0_i32_0 : i32, i32, i32
  }
  func.func @transform_1(%arg0: i32) -> (i32, i32) {
    %c0_i32 = arith.constant 0 : i32
    %c0_i32_0 = arith.constant 0 : i32
    %c0_i32_1 = arith.constant 0 : i32
    return %c0_i32, %c0_i32_0 : i32, i32
  }
  func.func @transform_2(%arg0: i32) -> (i32, i32) {
    %c0_i32 = arith.constant 0 : i32
    %c0_i32_0 = arith.constant 0 : i32
    %c0_i32_1 = arith.constant 0 : i32
    return %c0_i32, %c0_i32_0 : i32, i32
  }
  func.func @transform_3(%arg0: i32) -> (i32, i32, i32) {
    %c0_i32 = arith.constant 0 : i32
    %c0_i32_0 = arith.constant 0 : i32
    %c0_i32_1 = arith.constant 0 : i32
    %c0_i32_2 = arith.constant 0 : i32
    return %c0_i32, %c0_i32_0, %c0_i32_1 : i32, i32, i32
  }
  func.func @transform_4(%arg0: i32) -> (i32, i32, i32) {
    %c0_i32 = arith.constant 0 : i32
    %c0_i32_0 = arith.constant 0 : i32
    %c0_i32_1 = arith.constant 0 : i32
    %c0_i32_2 = arith.constant 0 : i32
    return %c0_i32, %c0_i32_0, %c0_i32_1 : i32, i32, i32
  }
  func.func @transform_5(%arg0: i32) -> (i32, i32) {
    %c0_i32 = arith.constant 0 : i32
    %c0_i32_0 = arith.constant 0 : i32
    %c0_i32_1 = arith.constant 0 : i32
    return %c0_i32, %c0_i32_0 : i32, i32
  }
  func.func @transform_6(%arg0: i32) -> (i32, i32) {
    %c0_i32 = arith.constant 0 : i32
    %c0_i32_0 = arith.constant 0 : i32
    %c0_i32_1 = arith.constant 0 : i32
    return %c0_i32, %c0_i32_0 : i32, i32
  }
  func.func @transform_7(%arg0: i32) -> (i32, i32) {
    %c0_i32 = arith.constant 0 : i32
    %c0_i32_0 = arith.constant 0 : i32
    %c0_i32_1 = arith.constant 0 : i32
    return %c0_i32, %c0_i32_0 : i32, i32
  }
  func.func @transform_8(%arg0: i32) -> (i32, i32) {
    %c0_i32 = arith.constant 0 : i32
    %c0_i32_0 = arith.constant 0 : i32
    %c0_i32_1 = arith.constant 0 : i32
    return %c0_i32, %c0_i32_0 : i32, i32
  }
  func.func @transform_9(%arg0: i32) -> (i32, i32) {
    %c0_i32 = arith.constant 0 : i32
    %c0_i32_0 = arith.constant 0 : i32
    %c0_i32_1 = arith.constant 0 : i32
    return %c0_i32, %c0_i32_0 : i32, i32
  }
  func.func @transform_10(%arg0: i32) -> (i32, i32, i32) {
    %c0_i32 = arith.constant 0 : i32
    %c0_i32_0 = arith.constant 0 : i32
    %c0_i32_1 = arith.constant 0 : i32
    %c0_i32_2 = arith.constant 0 : i32
    return %c0_i32, %c0_i32_0, %c0_i32_1 : i32, i32, i32
  }
  func.func @transform_11(%arg0: i32) -> (i32, i32) {
    %c0_i32 = arith.constant 0 : i32
    %c0_i32_0 = arith.constant 0 : i32
    %c0_i32_1 = arith.constant 0 : i32
    return %c0_i32, %c0_i32_0 : i32, i32
  }
  func.func @transform_12(%arg0: i32) -> (i32, i32) {
    %c0_i32 = arith.constant 0 : i32
    %c0_i32_0 = arith.constant 0 : i32
    %c0_i32_1 = arith.constant 0 : i32
    return %c0_i32, %c0_i32_0 : i32, i32
  }
  func.func @transform_13(%arg0: i32) -> (i32, i32) {
    %c0_i32 = arith.constant 0 : i32
    %c0_i32_0 = arith.constant 0 : i32
    %c0_i32_1 = arith.constant 0 : i32
    return %c0_i32, %c0_i32_0 : i32, i32
  }
  func.func @transform_14(%arg0: i32) -> (i32, i32) {
    %c0_i32 = arith.constant 0 : i32
    %c0_i32_0 = arith.constant 0 : i32
    %c0_i32_1 = arith.constant 0 : i32
    return %c0_i32, %c0_i32_0 : i32, i32
  }
  func.func @transform_15(%arg0: i32) -> (i32, i32) {
    %c0_i32 = arith.constant 0 : i32
    %c0_i32_0 = arith.constant 0 : i32
    %c0_i32_1 = arith.constant 0 : i32
    return %c0_i32, %c0_i32_0 : i32, i32
  }
  func.func @transform_16(%arg0: i32) -> (i32, i32) {
    %c0_i32 = arith.constant 0 : i32
    %c0_i32_0 = arith.constant 0 : i32
    %c0_i32_1 = arith.constant 0 : i32
    return %c0_i32, %c0_i32_0 : i32, i32
  }
  func.func @transform_17(%arg0: i32) -> (i32, i32) {
    %c0_i32 = arith.constant 0 : i32
    %c0_i32_0 = arith.constant 0 : i32
    %c0_i32_1 = arith.constant 0 : i32
    return %c0_i32, %c0_i32_0 : i32, i32
  }
  func.func @transform_18(%arg0: i32) -> (i32, i32) {
    %c0_i32 = arith.constant 0 : i32
    %c0_i32_0 = arith.constant 0 : i32
    %c0_i32_1 = arith.constant 0 : i32
    return %c0_i32, %c0_i32_0 : i32, i32
  }
  func.func @transform_19(%arg0: i32) -> (i32, i32) {
    %c0_i32 = arith.constant 0 : i32
    %c0_i32_0 = arith.constant 0 : i32
    return %arg0, %c0_i32 : i32, i32
  }
}

</mosaic_0001>

<llo_original>
// kernel: attention_cnn_forward.1
$region0: #{attention_cnn_forward.1}
  #allocation0 [shape = 'u32[]', space=smem, size = 0x4, offset = 0x4, fixed_abs, tag = 'smem constant byte address 0x4 - core index']
  #allocation1 [shape = 'u32[72,128]{1,0:T(1,128)}', space=vmem, size = 0x9000, scoped, tag = 'internal scratch']
  %s0 = inlined_call_operand.vmem [shape: f32[2,12,8], index: 0, kind: input, shape index: {}]
  %s1 = inlined_call_operand.vmem [shape: f32[16,96], index: 1, kind: input, shape index: {}]
  %s2 = inlined_call_operand.vmem [shape: f32[96,8], index: 2, kind: input, shape index: {}]
  %s3 = inlined_call_operand.vmem [shape: f32[2,8,8], index: 3, kind: input, shape index: {}]
  %s4 = inlined_call_operand.vmem [shape: f32[2,1,8], index: 4, kind: input, shape index: {}]
  %s5 = inlined_call_operand.vmem [shape: f32[8,8], index: 5, kind: input, shape index: {}]
  %s6 = inlined_call_operand.vmem [shape: f32[1,8], index: 6, kind: input, shape index: {}]
  %s7 = inlined_call_operand.vmem [shape: f32[8,8], index: 7, kind: input, shape index: {}]
  %s8 = inlined_call_operand.vmem [shape: f32[1,8], index: 8, kind: input, shape index: {}]
  %s9 = inlined_call_operand.vmem [shape: f32[32,32], index: 9, kind: input, shape index: {}]
  %s10 = inlined_call_operand.vmem [shape: f32[2,8,128], index: 10, kind: input, shape index: {}]
  %s11 = inlined_call_operand.vmem [shape: f32[32,128], index: 11, kind: input, shape index: {}]
  %s12 = inlined_call_operand.vmem [shape: f32[2,32], index: 12, kind: input, shape index: {}]
  %s13 = inlined_call_operand.vmem [shape: f32[128,300], index: 13, kind: input, shape index: {}]
  %s14 = inlined_call_operand.vmem [shape: f32[1,300], index: 14, kind: input, shape index: {}]
  %s15 = inlined_call_operand.vmem [shape: f32[300,100], index: 15, kind: input, shape index: {}]
  %s16 = inlined_call_operand.vmem [shape: f32[1,100], index: 16, kind: input, shape index: {}]
  %s17 = inlined_call_operand.vmem [shape: f32[100,128], index: 17, kind: input, shape index: {}]
  %s18 = inlined_call_operand.vmem [shape: f32[1,128], index: 18, kind: input, shape index: {}]
  %s19 = inlined_call_operand.hbm [shape: f32[2,128], index: 19, kind: output, shape index: {}]
  %s20 = sld [smem:[#allocation0]]
  $region86: #{attention_cnn_forward.1} parent=0
    _
  %s22 = ssub.s32 1, %s20
  %s23 = scalar_select 0, %s22, %s20
  $region1: #{attention_cnn_forward.1} parent=0
    #allocation2 [shape = 'u8[1024]{0}', space=vmem, size = 0x400, scoped, tag = 'output window, operand 0, single buffered']
    #allocation3 [shape = 's32[1]{0}', space=sflag, size = 0x4, scoped, tag = 'scoped memory for attention_cnn_forward.1']
    %24 = vsyncpa [#allocation3], 0
    // Predicated region
    $region2: #{attention_cnn_forward.1} parent=1 // pred_check
      _
    $region3: #{attention_cnn_forward.1} parent=1 // pred_check_branch
      %26 = sbr.rel (0) target = $region5
    $region4: #{attention_cnn_forward.1} parent=1 // pred_region
      _
    $region5: #{attention_cnn_forward.1} parent=1 // pred_fallthru
      _
    // Predicated region
    $region6: #{attention_cnn_forward.1} parent=1 // pred_check
      _
    $region7: #{attention_cnn_forward.1} parent=1 // pred_check_branch
      %28 = sbr.rel (0) target = $region9
    $region8: #{attention_cnn_forward.1} parent=1 // pred_region
      _
    $region9: #{attention_cnn_forward.1} parent=1 // pred_fallthru
      _
    // Predicated region
    $region10: #{attention_cnn_forward.1} parent=1 // pred_check
      _
    $region11: #{attention_cnn_forward.1} parent=1 // pred_check_branch
      %30 = sbr.rel (0) target = $region13
    $region12: #{attention_cnn_forward.1} parent=1 // pred_region
      _
    $region13: #{attention_cnn_forward.1} parent=1 // pred_fallthru
      _
    // Predicated region
    $region14: #{attention_cnn_forward.1} parent=1 // pred_check
      _
    $region15: #{attention_cnn_forward.1} parent=1 // pred_check_branch
      %32 = sbr.rel (0) target = $region17
    $region16: #{attention_cnn_forward.1} parent=1 // pred_region
      _
    $region17: #{attention_cnn_forward.1} parent=1 // pred_fallthru
      _
    // Predicated region
    $region18: #{attention_cnn_forward.1} parent=1 // pred_check
      _
    $region19: #{attention_cnn_forward.1} parent=1 // pred_check_branch
      %34 = sbr.rel (0) target = $region21
    $region20: #{attention_cnn_forward.1} parent=1 // pred_region
      _
    $region21: #{attention_cnn_forward.1} parent=1 // pred_fallthru
      _
    // Predicated region
    $region22: #{attention_cnn_forward.1} parent=1 // pred_check
      _
    $region23: #{attention_cnn_forward.1} parent=1 // pred_check_branch
      %36 = sbr.rel (0) target = $region25
    $region24: #{attention_cnn_forward.1} parent=1 // pred_region
      _
    $region25: #{attention_cnn_forward.1} parent=1 // pred_fallthru
      _
    // Predicated region
    $region26: #{attention_cnn_forward.1} parent=1 // pred_check
      _
    $region27: #{attention_cnn_forward.1} parent=1 // pred_check_branch
      %38 = sbr.rel (0) target = $region29
    $region28: #{attention_cnn_forward.1} parent=1 // pred_region
      _
    $region29: #{attention_cnn_forward.1} parent=1 // pred_fallthru
      _
    // Predicated region
    $region30: #{attention_cnn_forward.1} parent=1 // pred_check
      _
    $region31: #{attention_cnn_forward.1} parent=1 // pred_check_branch
      %40 = sbr.rel (0) target = $region33
    $region32: #{attention_cnn_forward.1} parent=1 // pred_region
      _
    $region33: #{attention_cnn_forward.1} parent=1 // pred_fallthru
      _
    // Predicated region
    $region34: #{attention_cnn_forward.1} parent=1 // pred_check
      _
    $region35: #{attention_cnn_forward.1} parent=1 // pred_check_branch
      %42 = sbr.rel (0) target = $region37
    $region36: #{attention_cnn_forward.1} parent=1 // pred_region
      _
    $region37: #{attention_cnn_forward.1} parent=1 // pred_fallthru
      _
    // Predicated region
    $region38: #{attention_cnn_forward.1} parent=1 // pred_check
      _
    $region39: #{attention_cnn_forward.1} parent=1 // pred_check_branch
      %44 = sbr.rel (0) target = $region41
    $region40: #{attention_cnn_forward.1} parent=1 // pred_region
      _
    $region41: #{attention_cnn_forward.1} parent=1 // pred_fallthru
      _
    // Predicated region
    $region42: #{attention_cnn_forward.1} parent=1 // pred_check
      _
    $region43: #{attention_cnn_forward.1} parent=1 // pred_check_branch
      %46 = sbr.rel (0) target = $region45
    $region44: #{attention_cnn_forward.1} parent=1 // pred_region
      _
    $region45: #{attention_cnn_forward.1} parent=1 // pred_fallthru
      _
    // Predicated region
    $region46: #{attention_cnn_forward.1} parent=1 // pred_check
      _
    $region47: #{attention_cnn_forward.1} parent=1 // pred_check_branch
      %48 = sbr.rel (0) target = $region49
    $region48: #{attention_cnn_forward.1} parent=1 // pred_region
      _
    $region49: #{attention_cnn_forward.1} parent=1 // pred_fallthru
      _
    // Predicated region
    $region50: #{attention_cnn_forward.1} parent=1 // pred_check
      _
    $region51: #{attention_cnn_forward.1} parent=1 // pred_check_branch
      %50 = sbr.rel (0) target = $region53
    $region52: #{attention_cnn_forward.1} parent=1 // pred_region
      _
    $region53: #{attention_cnn_forward.1} parent=1 // pred_fallthru
      _
    // Predicated region
    $region54: #{attention_cnn_forward.1} parent=1 // pred_check
      _
    $region55: #{attention_cnn_forward.1} parent=1 // pred_check_branch
      %52 = sbr.rel (0) target = $region57
    $region56: #{attention_cnn_forward.1} parent=1 // pred_region
      _
    $region57: #{attention_cnn_forward.1} parent=1 // pred_fallthru
      _
    // Predicated region
    $region58: #{attention_cnn_forward.1} parent=1 // pred_check
      _
    $region59: #{attention_cnn_forward.1} parent=1 // pred_check_branch
      %54 = sbr.rel (0) target = $region61
    $region60: #{attention_cnn_forward.1} parent=1 // pred_region
      _
    $region61: #{attention_cnn_forward.1} parent=1 // pred_fallthru
      _
    // Predicated region
    $region62: #{attention_cnn_forward.1} parent=1 // pred_check
      _
    $region63: #{attention_cnn_forward.1} parent=1 // pred_check_branch
      %56 = sbr.rel (0) target = $region65
    $region64: #{attention_cnn_forward.1} parent=1 // pred_region
      _
    $region65: #{attention_cnn_forward.1} parent=1 // pred_fallthru
      _
    // Predicated region
    $region66: #{attention_cnn_forward.1} parent=1 // pred_check
      _
    $region67: #{attention_cnn_forward.1} parent=1 // pred_check_branch
      %58 = sbr.rel (0) target = $region69
    $region68: #{attention_cnn_forward.1} parent=1 // pred_region
      _
    $region69: #{attention_cnn_forward.1} parent=1 // pred_fallthru
      _
    // Predicated region
    $region70: #{attention_cnn_forward.1} parent=1 // pred_check
      _
    $region71: #{attention_cnn_forward.1} parent=1 // pred_check_branch
      %60 = sbr.rel (0) target = $region73
    $region72: #{attention_cnn_forward.1} parent=1 // pred_region
      _
    $region73: #{attention_cnn_forward.1} parent=1 // pred_fallthru
      _
    // Predicated region
    $region74: #{attention_cnn_forward.1} parent=1 // pred_check
      _
    $region75: #{attention_cnn_forward.1} parent=1 // pred_check_branch
      %62 = sbr.rel (0) target = $region77
    $region76: #{attention_cnn_forward.1} parent=1 // pred_region
      _
    $region77: #{attention_cnn_forward.1} parent=1 // pred_fallthru
      _
    %v63 = vld [vmem:[%s2] sm:$0xff]
    %v64 = vld [vmem:[%s2 + $0x8] sm:$0xff]
    %v65 = vld [vmem:[%s2 + $0x10] sm:$0xff]
    %v66 = vld [vmem:[%s2 + $0x18] sm:$0xff]
    %v67 = vld [vmem:[%s2 + $0x20] sm:$0xff]
    %v68 = vld [vmem:[%s2 + $0x28] sm:$0xff]
    %v69 = vld [vmem:[%s2 + $0x30] sm:$0xff]
    %v70 = vld [vmem:[%s2 + $0x38] sm:$0xff]
    %v71 = vld [vmem:[%s2 + $0x40] sm:$0xff]
    %v72 = vld [vmem:[%s2 + $0x48] sm:$0xff]
    %v73 = vld [vmem:[%s2 + $0x50] sm:$0xff]
    %v74 = vld [vmem:[%s2 + $0x58] sm:$0xff]
    %v75 = vld [vmem:[%s1] sm:$0xff]
    %v76 = vld [vmem:[%s1 + $0x8] sm:$0xff]
    %v77 = vld [vmem:[%s0] sm:$0xff]
    %v78 = vld [vmem:[%s0 + $0x8] sm:$0xf]
    %vm81 = vcmask 1043456
    %v82 = vrot.slane %v77, 4
    %v83 = vrot.slane %v78, 4
    %v84 = vsel %vm81, %v82, %v83
    %v87 = vsel %vm81, %v78, %v82
    %v88 = vmul.f32 %v77, %v63
    %v89 = vmul.f32 %v87, %v64
    %v90 = vmul.f32 %v84, %v65
    %v91 = vmul.f32 %v77, %v66
    %v92 = vmul.f32 %v87, %v67
    %v93 = vmul.f32 %v84, %v68
    %v94 = vmul.f32 %v77, %v69
    %v95 = vmul.f32 %v87, %v70
    %v96 = vmul.f32 %v84, %v71
    %v97 = vmul.f32 %v77, %v72
    %v98 = vmul.f32 %v87, %v73
    %v99 = vmul.f32 %v84, %v74
    %vm100 = vcmask 785408
    %v102 = vsel %vm100, %v75, 0
    %v105 = vsel %vm100, %v76, 0
    %107 = vmatpush.msra.mxu0 0.0
    %108 = vmatpush.msra.mxu0 0.0
    %109 = vmatpush.msra.mxu0 0.0
    %110 = vmatpush.msra.mxu0 0.0
    %111 = vmatpush.msra.mxu0 %v99
    %112 = vmatpush.msra.mxu0 %v98
    %113 = vmatpush.msra.mxu0 %v97
    %114 = vmatpush.msra.mxu0 %v96
    %115 = vmatpush.msra.mxu0 %v95
    %116 = vmatpush.msra.mxu0 %v94
    %117 = vmatpush.msra.mxu0 %v93
    %118 = vmatpush.msra.mxu0 %v92
    %119 = vmatpush.msra.mxu0 %v91
    %120 = vmatpush.msra.mxu0 %v90
    %121 = vmatpush.msra.mxu0 %v89
    %122 = vmatpush.msra.mxu0 %v88
    %123 = vmatmul.f32.gmra.mxu0 %v102
    %v124 = vpop.f32.mrf.mxu0
    %v125 = vadd.f32 0.0, %v124
    %126 = vmatmul.f32.gmra.mxu0 %v105
    %v127 = vpop.f32.mrf.mxu0
    %v128 = vadd.f32 0.0, %v127
    %129 = vdwg.mxu0
    %s130 = scalar_lea.vmem %s0, 16
    %v131 = vld [vmem:[%s130] sm:$0xff]
    %v132 = vld [vmem:[%s130 + $0x8] sm:$0xf]
    %v135 = vrot.slane %v131, 4
    %v136 = vrot.slane %v132, 4
    %v137 = vsel %vm81, %v135, %v136
    %v140 = vsel %vm81, %v132, %v135
    %v141 = vmul.f32 %v131, %v63
    %v142 = vmul.f32 %v140, %v64
    %v143 = vmul.f32 %v137, %v65
    %v144 = vmul.f32 %v131, %v66
    %v145 = vmul.f32 %v140, %v67
    %v146 = vmul.f32 %v137, %v68
    %v147 = vmul.f32 %v131, %v69
    %v148 = vmul.f32 %v140, %v70
    %v149 = vmul.f32 %v137, %v71
    %v150 = vmul.f32 %v131, %v72
    %v151 = vmul.f32 %v140, %v73
    %v152 = vmul.f32 %v137, %v74
    %153 = vmatpush.msra.mxu0 0.0
    %154 = vmatpush.msra.mxu0 0.0
    %155 = vmatpush.msra.mxu0 0.0
    %156 = vmatpush.msra.mxu0 0.0
    %157 = vmatpush.msra.mxu0 %v152
    %158 = vmatpush.msra.mxu0 %v151
    %159 = vmatpush.msra.mxu0 %v150
    %160 = vmatpush.msra.mxu0 %v149
    %161 = vmatpush.msra.mxu0 %v148
    %162 = vmatpush.msra.mxu0 %v147
    %163 = vmatpush.msra.mxu0 %v146
    %164 = vmatpush.msra.mxu0 %v145
    %165 = vmatpush.msra.mxu0 %v144
    %166 = vmatpush.msra.mxu0 %v143
    %167 = vmatpush.msra.mxu0 %v142
    %168 = vmatpush.msra.mxu0 %v141
    %169 = vmatmul.f32.gmra.mxu0 %v102
    %v170 = vpop.f32.mrf.mxu0
    %v171 = vadd.f32 0.0, %v170
    %172 = vmatmul.f32.gmra.mxu0 %v105
    %v173 = vpop.f32.mrf.mxu0
    %v174 = vadd.f32 0.0, %v173
    %175 = vdwg.mxu0
    %v176 = vld [vmem:[%s5] sm:$0xff]
    %v177 = vld [vmem:[%s6] sm:$0x1]
    %v179 = vperm.slane %v177, 0
    %vm181 = vcmask 64512
    %v183 = vsel %vm181, %v125, 0
    %v186 = vsel %vm181, %v128, 0
    %v189 = vsel %vm181, %v171, 0
    %v192 = vsel %vm181, %v174, 0
    %194 = vmatpush.msra.mxu0 0.0
    %195 = vmatpush.msra.mxu0 0.0
    %196 = vmatpush.msra.mxu0 0.0
    %197 = vmatpush.msra.mxu0 0.0
    %198 = vmatpush.msra.mxu0 0.0
    %199 = vmatpush.msra.mxu0 0.0
    %200 = vmatpush.msra.mxu0 0.0
    %201 = vmatpush.msra.mxu0 0.0
    %202 = vmatpush.msra.mxu0 0.0
    %203 = vmatpush.msra.mxu0 0.0
    %204 = vmatpush.msra.mxu0 0.0
    %205 = vmatpush.msra.mxu0 0.0
    %206 = vmatpush.msra.mxu0 0.0
    %207 = vmatpush.msra.mxu0 0.0
    %208 = vmatpush.msra.mxu0 0.0
    %209 = vmatpush.msra.mxu0 %v176
    %210 = vmatmul.f32.gmra.mxu0 %v183
    %v211 = vpop.f32.mrf.mxu0
    %v212 = vadd.f32 %v179, %v211
    %213 = vmatmul.f32.gmra.mxu0 %v186
    %v214 = vpop.f32.mrf.mxu0
    %v215 = vadd.f32 %v179, %v214
    %216 = vmatmul.f32.gmra.mxu0 %v189
    %v217 = vpop.f32.mrf.mxu0
    %v218 = vadd.f32 %v179, %v217
    %219 = vmatmul.f32.gmra.mxu0 %v192
    %v220 = vpop.f32.mrf.mxu0
    %v221 = vadd.f32 %v179, %v220
    %222 = vdwg.mxu0
    %v223 = vld [vmem:[%s7] sm:$0xff]
    %v224 = vld [vmem:[%s8] sm:$0x1]
    %v226 = vperm.slane %v224, 0
    %228 = vmatpush.msra.mxu0 0.0
    %229 = vmatpush.msra.mxu0 0.0
    %230 = vmatpush.msra.mxu0 0.0
    %231 = vmatpush.msra.mxu0 0.0
    %232 = vmatpush.msra.mxu0 0.0
    %233 = vmatpush.msra.mxu0 0.0
    %234 = vmatpush.msra.mxu0 0.0
    %235 = vmatpush.msra.mxu0 0.0
    %236 = vmatpush.msra.mxu0 0.0
    %237 = vmatpush.msra.mxu0 0.0
    %238 = vmatpush.msra.mxu0 0.0
    %239 = vmatpush.msra.mxu0 0.0
    %240 = vmatpush.msra.mxu0 0.0
    %241 = vmatpush.msra.mxu0 0.0
    %242 = vmatpush.msra.mxu0 0.0
    %243 = vmatpush.msra.mxu0 %v223
    %244 = vmatmul.f32.gmra.mxu0 %v183
    %v245 = vpop.f32.mrf.mxu0
    %v246 = vadd.f32 %v226, %v245
    %247 = vmatmul.f32.gmra.mxu0 %v186
    %v248 = vpop.f32.mrf.mxu0
    %v249 = vadd.f32 %v226, %v248
    %250 = vmatmul.f32.gmra.mxu0 %v189
    %v251 = vpop.f32.mrf.mxu0
    %v252 = vadd.f32 %v226, %v251
    %253 = vmatmul.f32.gmra.mxu0 %v192
    %v254 = vpop.f32.mrf.mxu0
    %v255 = vadd.f32 %v226, %v254
    %256 = vdwg.mxu0
    %v257 = vld [vmem:[%s9] sm:$0xff]
    %v258 = vld [vmem:[%s9 + $0x8] sm:$0xff]
    %v259 = vld [vmem:[%s9 + $0x10] sm:$0xff]
    %v260 = vld [vmem:[%s9 + $0x18] sm:$0xff]
    %v261 = vld [vmem:[%s3] sm:$0xff]
    %v262 = vld [vmem:[%s4] sm:$0x1]
    %v264 = vperm.slane %v262, 0
    %266 = vmatpush.msra.mxu0 0.0
    %267 = vmatpush.msra.mxu0 0.0
    %268 = vmatpush.msra.mxu0 0.0
    %269 = vmatpush.msra.mxu0 0.0
    %270 = vmatpush.msra.mxu0 0.0
    %271 = vmatpush.msra.mxu0 0.0
    %272 = vmatpush.msra.mxu0 0.0
    %273 = vmatpush.msra.mxu0 0.0
    %274 = vmatpush.msra.mxu0 0.0
    %275 = vmatpush.msra.mxu0 0.0
    %276 = vmatpush.msra.mxu0 0.0
    %277 = vmatpush.msra.mxu0 0.0
    %278 = vmatpush.msra.mxu0 0.0
    %279 = vmatpush.msra.mxu0 0.0
    %280 = vmatpush.msra.mxu0 0.0
    %281 = vmatpush.msra.mxu0 %v261
    %282 = vmatmul.f32.gmra.mxu0 %v183
    %v283 = vpop.f32.mrf.mxu0
    %v284 = vadd.f32 %v264, %v283
    %285 = vmatmul.f32.gmra.mxu0 %v186
    %v286 = vpop.f32.mrf.mxu0
    %v287 = vadd.f32 %v264, %v286
    %288 = vmatmul.f32.gmra.mxu0 %v189
    %v289 = vpop.f32.mrf.mxu0
    %v290 = vadd.f32 %v264, %v289
    %291 = vmatmul.f32.gmra.mxu0 %v192
    %v292 = vpop.f32.mrf.mxu0
    %v293 = vadd.f32 %v264, %v292
    %294 = vdwg.mxu0
    %v296 = vsel %vm181, %v284, 0
    %v299 = vsel %vm181, %v287, 0
    %v302 = vsel %vm181, %v290, 0
    %v305 = vsel %vm181, %v293, 0
    %v308 = vsel %vm181, %v212, 0
    %v311 = vsel %vm181, %v215, 0
    %v314 = vsel %vm181, %v218, 0
    %v317 = vsel %vm181, %v221, 0
    %319 = vmatpush.xpose.msra.mxu0 0.0
    %320 = vmatpush.xpose.msra.mxu0 0.0
    %321 = vmatpush.xpose.msra.mxu0 0.0
    %322 = vmatpush.xpose.msra.mxu0 0.0
    %323 = vmatpush.xpose.msra.mxu0 0.0
    %324 = vmatpush.xpose.msra.mxu0 0.0
    %325 = vmatpush.xpose.msra.mxu0 0.0
    %326 = vmatpush.xpose.msra.mxu0 0.0
    %327 = vmatpush.xpose.msra.mxu0 0.0
    %328 = vmatpush.xpose.msra.mxu0 0.0
    %329 = vmatpush.xpose.msra.mxu0 0.0
    %330 = vmatpush.xpose.msra.mxu0 0.0
    %331 = vmatpush.xpose.msra.mxu0 %v317
    %332 = vmatpush.xpose.msra.mxu0 %v314
    %333 = vmatpush.xpose.msra.mxu0 %v311
    %334 = vmatpush.xpose.msra.mxu0 %v308
    %335 = vmatmul.f32.gmra.mxu0 %v296
    %v336 = vpop.f32.mrf.mxu0
    %v337 = vadd.f32 %v257, %v336
    %338 = vmatmul.f32.gmra.mxu0 %v299
    %v339 = vpop.f32.mrf.mxu0
    %v340 = vadd.f32 %v258, %v339
    %341 = vmatmul.f32.gmra.mxu0 %v302
    %v342 = vpop.f32.mrf.mxu0
    %v343 = vadd.f32 %v259, %v342
    %344 = vmatmul.f32.gmra.mxu0 %v305
    %v345 = vpop.f32.mrf.mxu0
    %v346 = vadd.f32 %v260, %v345
    %347 = vdwg.mxu0
    %vm348 = vcmask 261120
    %v349 = vsel %vm348, %v337, -inf
    %350 = vmax.xlane.f32.xlu0 %v349
    %v351 = vpop.xlane.xlu0 %350
    %v352 = vsel %vm348, %v340, -inf
    %353 = vmax.xlane.f32.xlu0 %v352
    %v354 = vpop.xlane.xlu0 %353
    %v355 = vsel %vm348, %v343, -inf
    %356 = vmax.xlane.f32.xlu0 %v355
    %v357 = vpop.xlane.xlu0 %356
    %v358 = vsel %vm348, %v346, -inf
    %359 = vmax.xlane.f32.xlu0 %v358
    %v360 = vpop.xlane.xlu0 %359
    %v361 = vsub.f32 %v337, %v351
    %v362 = vsub.f32 %v340, %v354
    %v363 = vsub.f32 %v343, %v357
    %v364 = vsub.f32 %v346, %v360
    %v365 = vmul.f32 %v361, 1.442695
    %v366 = vpow.pop %v365
    %v367 = vmul.f32 %v362, 1.442695
    %v368 = vpow.pop %v367
    %v369 = vmul.f32 %v363, 1.442695
    %v370 = vpow.pop %v369
    %v371 = vmul.f32 %v364, 1.442695
    %v372 = vpow.pop %v371
    %v373 = vsel %vm348, %v366, 0.0
    %374 = vadd.xlane.f32.xlu0 %v373
    %v375 = vpop.xlane.xlu0 %374
    %v376 = vsel %vm348, %v368, 0.0
    %377 = vadd.xlane.f32.xlu0 %v376
    %v378 = vpop.xlane.xlu0 %377
    %v379 = vsel %vm348, %v370, 0.0
    %380 = vadd.xlane.f32.xlu0 %v379
    %v381 = vpop.xlane.xlu0 %380
    %v382 = vsel %vm348, %v372, 0.0
    %383 = vadd.xlane.f32.xlu0 %v382
    %v384 = vpop.xlane.xlu0 %383
    %v385 = vrcp.pop %v375
    %v386 = vmul.f32 %v375, %v385
    %v387 = vsub.f32 1.0, %v386
    %v388 = vmul.f32 %v385, %v387
    %v389 = vadd.f32 %v385, %v388
    %vm390 = vweird.f32 %v375
    %vm391 = vweird.f32 %v385
    %vm392 = vmor %vm390, %vm391
    %v393 = vsel %vm392, %v385, %v389
    %v394 = vand.u32 2147483647, %v375
    %vm395 = vcmp.eq.f32.partialorder %v394, 8.507059e+37
    %v396 = vand.u32 %v375, 2147483648
    %v397 = vor.u32 1.1754944e-38, %v396
    %v398 = vsel %vm395, %v397, %v393
    %v399 = vrcp.pop %v378
    %v400 = vmul.f32 %v378, %v399
    %v401 = vsub.f32 1.0, %v400
    %v402 = vmul.f32 %v399, %v401
    %v403 = vadd.f32 %v399, %v402
    %vm404 = vweird.f32 %v378
    %vm405 = vweird.f32 %v399
    %vm406 = vmor %vm404, %vm405
    %v407 = vsel %vm406, %v399, %v403
    %v408 = vand.u32 2147483647, %v378
    %vm409 = vcmp.eq.f32.partialorder %v408, 8.507059e+37
    %v410 = vand.u32 %v378, 2147483648
    %v411 = vor.u32 1.1754944e-38, %v410
    %v412 = vsel %vm409, %v411, %v407
    %v413 = vrcp.pop %v381
    %v414 = vmul.f32 %v381, %v413
    %v415 = vsub.f32 1.0, %v414
    %v416 = vmul.f32 %v413, %v415
    %v417 = vadd.f32 %v413, %v416
    %vm418 = vweird.f32 %v381
    %vm419 = vweird.f32 %v413
    %vm420 = vmor %vm418, %vm419
    %v421 = vsel %vm420, %v413, %v417
    %v422 = vand.u32 2147483647, %v381
    %vm423 = vcmp.eq.f32.partialorder %v422, 8.507059e+37
    %v424 = vand.u32 %v381, 2147483648
    %v425 = vor.u32 1.1754944e-38, %v424
    %v426 = vsel %vm423, %v425, %v421
    %v427 = vrcp.pop %v384
    %v428 = vmul.f32 %v384, %v427
    %v429 = vsub.f32 1.0, %v428
    %v430 = vmul.f32 %v427, %v429
    %v431 = vadd.f32 %v427, %v430
    %vm432 = vweird.f32 %v384
    %vm433 = vweird.f32 %v427
    %vm434 = vmor %vm432, %vm433
    %v435 = vsel %vm434, %v427, %v431
    %v436 = vand.u32 2147483647, %v384
    %vm437 = vcmp.eq.f32.partialorder %v436, 8.507059e+37
    %v438 = vand.u32 %v384, 2147483648
    %v439 = vor.u32 1.1754944e-38, %v438
    %v440 = vsel %vm437, %v439, %v435
    %v441 = vmul.f32 %v366, %v398
    %v442 = vmul.f32 %v368, %v412
    %v443 = vmul.f32 %v370, %v426
    %v444 = vmul.f32 %v372, %v440
    %v446 = vsel %vm348, %v441, 0
    %v449 = vsel %vm348, %v442, 0
    %v452 = vsel %vm348, %v443, 0
    %v455 = vsel %vm348, %v444, 0
    %457 = vmatpush.msra.mxu0 0.0
    %458 = vmatpush.msra.mxu0 0.0
    %459 = vmatpush.msra.mxu0 0.0
    %460 = vmatpush.msra.mxu0 0.0
    %461 = vmatpush.msra.mxu0 0.0
    %462 = vmatpush.msra.mxu0 0.0
    %463 = vmatpush.msra.mxu0 0.0
    %464 = vmatpush.msra.mxu0 0.0
    %465 = vmatpush.msra.mxu0 0.0
    %466 = vmatpush.msra.mxu0 0.0
    %467 = vmatpush.msra.mxu0 0.0
    %468 = vmatpush.msra.mxu0 0.0
    %469 = vmatpush.msra.mxu0 %v255
    %470 = vmatpush.msra.mxu0 %v252
    %471 = vmatpush.msra.mxu0 %v249
    %472 = vmatpush.msra.mxu0 %v246
    %473 = vmatmul.f32.gmra.mxu0 %v446
    %v474 = vpop.f32.mrf.mxu0
    %v475 = vadd.f32 0.0, %v474
    %476 = vmatmul.f32.gmra.mxu0 %v449
    %v477 = vpop.f32.mrf.mxu0
    %v478 = vadd.f32 0.0, %v477
    %479 = vmatmul.f32.gmra.mxu0 %v452
    %v480 = vpop.f32.mrf.mxu0
    %v481 = vadd.f32 0.0, %v480
    %482 = vmatmul.f32.gmra.mxu0 %v455
    %v483 = vpop.f32.mrf.mxu0
    %v484 = vadd.f32 0.0, %v483
    %485 = vdwg.mxu0
    %v486 = vld [vmem:[%s10] sm:$0xff]
    %s487 = scalar_lea.vmem %s3, 8
    %v488 = vld [vmem:[%s487] sm:$0xff]
    %s489 = scalar_lea.vmem %s4, 1
    %v490 = vld [vmem:[%s489] sm:$0x1]
    %v492 = vperm.slane %v490, 0
    %494 = vmatpush.msra.mxu0 0.0
    %495 = vmatpush.msra.mxu0 0.0
    %496 = vmatpush.msra.mxu0 0.0
    %497 = vmatpush.msra.mxu0 0.0
    %498 = vmatpush.msra.mxu0 0.0
    %499 = vmatpush.msra.mxu0 0.0
    %500 = vmatpush.msra.mxu0 0.0
    %501 = vmatpush.msra.mxu0 0.0
    %502 = vmatpush.msra.mxu0 0.0
    %503 = vmatpush.msra.mxu0 0.0
    %504 = vmatpush.msra.mxu0 0.0
    %505 = vmatpush.msra.mxu0 0.0
    %506 = vmatpush.msra.mxu0 0.0
    %507 = vmatpush.msra.mxu0 0.0
    %508 = vmatpush.msra.mxu0 0.0
    %509 = vmatpush.msra.mxu0 %v488
    %510 = vmatmul.f32.gmra.mxu0 %v183
    %v511 = vpop.f32.mrf.mxu0
    %v512 = vadd.f32 %v492, %v511
    %513 = vmatmul.f32.gmra.mxu0 %v186
    %v514 = vpop.f32.mrf.mxu0
    %v515 = vadd.f32 %v492, %v514
    %516 = vmatmul.f32.gmra.mxu0 %v189
    %v517 = vpop.f32.mrf.mxu0
    %v518 = vadd.f32 %v492, %v517
    %519 = vmatmul.f32.gmra.mxu0 %v192
    %v520 = vpop.f32.mrf.mxu0
    %v521 = vadd.f32 %v492, %v520
    %522 = vdwg.mxu0
    %v524 = vsel %vm181, %v512, 0
    %v527 = vsel %vm181, %v515, 0
    %v530 = vsel %vm181, %v518, 0
    %v533 = vsel %vm181, %v521, 0
    %535 = vmatpush.xpose.msra.mxu0 0.0
    %536 = vmatpush.xpose.msra.mxu0 0.0
    %537 = vmatpush.xpose.msra.mxu0 0.0
    %538 = vmatpush.xpose.msra.mxu0 0.0
    %539 = vmatpush.xpose.msra.mxu0 0.0
    %540 = vmatpush.xpose.msra.mxu0 0.0
    %541 = vmatpush.xpose.msra.mxu0 0.0
    %542 = vmatpush.xpose.msra.mxu0 0.0
    %543 = vmatpush.xpose.msra.mxu0 0.0
    %544 = vmatpush.xpose.msra.mxu0 0.0
    %545 = vmatpush.xpose.msra.mxu0 0.0
    %546 = vmatpush.xpose.msra.mxu0 0.0
    %547 = vmatpush.xpose.msra.mxu0 %v317
    %548 = vmatpush.xpose.msra.mxu0 %v314
    %549 = vmatpush.xpose.msra.mxu0 %v311
    %550 = vmatpush.xpose.msra.mxu0 %v308
    %551 = vmatmul.f32.gmra.mxu0 %v524
    %v552 = vpop.f32.mrf.mxu0
    %v553 = vadd.f32 %v257, %v552
    %554 = vmatmul.f32.gmra.mxu0 %v527
    %v555 = vpop.f32.mrf.mxu0
    %v556 = vadd.f32 %v258, %v555
    %557 = vmatmul.f32.gmra.mxu0 %v530
    %v558 = vpop.f32.mrf.mxu0
    %v559 = vadd.f32 %v259, %v558
    %560 = vmatmul.f32.gmra.mxu0 %v533
    %v561 = vpop.f32.mrf.mxu0
    %v562 = vadd.f32 %v260, %v561
    %563 = vdwg.mxu0
    %v564 = vsel %vm348, %v553, -inf
    %565 = vmax.xlane.f32.xlu0 %v564
    %v566 = vpop.xlane.xlu0 %565
    %v567 = vsel %vm348, %v556, -inf
    %568 = vmax.xlane.f32.xlu0 %v567
    %v569 = vpop.xlane.xlu0 %568
    %v570 = vsel %vm348, %v559, -inf
    %571 = vmax.xlane.f32.xlu0 %v570
    %v572 = vpop.xlane.xlu0 %571
    %v573 = vsel %vm348, %v562, -inf
    %574 = vmax.xlane.f32.xlu0 %v573
    %v575 = vpop.xlane.xlu0 %574
    %v576 = vsub.f32 %v553, %v566
    %v577 = vsub.f32 %v556, %v569
    %v578 = vsub.f32 %v559, %v572
    %v579 = vsub.f32 %v562, %v575
    %v580 = vmul.f32 %v576, 1.442695
    %v581 = vpow.pop %v580
    %v582 = vmul.f32 %v577, 1.442695
    %v583 = vpow.pop %v582
    %v584 = vmul.f32 %v578, 1.442695
    %v585 = vpow.pop %v584
    %v586 = vmul.f32 %v579, 1.442695
    %v587 = vpow.pop %v586
    %v588 = vsel %vm348, %v581, 0.0
    %589 = vadd.xlane.f32.xlu0 %v588
    %v590 = vpop.xlane.xlu0 %589
    %v591 = vsel %vm348, %v583, 0.0
    %592 = vadd.xlane.f32.xlu0 %v591
    %v593 = vpop.xlane.xlu0 %592
    %v594 = vsel %vm348, %v585, 0.0
    %595 = vadd.xlane.f32.xlu0 %v594
    %v596 = vpop.xlane.xlu0 %595
    %v597 = vsel %vm348, %v587, 0.0
    %598 = vadd.xlane.f32.xlu0 %v597
    %v599 = vpop.xlane.xlu0 %598
    %v600 = vrcp.pop %v590
    %v601 = vmul.f32 %v590, %v600
    %v602 = vsub.f32 1.0, %v601
    %v603 = vmul.f32 %v600, %v602
    %v604 = vadd.f32 %v600, %v603
    %vm605 = vweird.f32 %v590
    %vm606 = vweird.f32 %v600
    %vm607 = vmor %vm605, %vm606
    %v608 = vsel %vm607, %v600, %v604
    %v609 = vand.u32 2147483647, %v590
    %vm610 = vcmp.eq.f32.partialorder %v609, 8.507059e+37
    %v611 = vand.u32 %v590, 2147483648
    %v612 = vor.u32 1.1754944e-38, %v611
    %v613 = vsel %vm610, %v612, %v608
    %v614 = vrcp.pop %v593
    %v615 = vmul.f32 %v593, %v614
    %v616 = vsub.f32 1.0, %v615
    %v617 = vmul.f32 %v614, %v616
    %v618 = vadd.f32 %v614, %v617
    %vm619 = vweird.f32 %v593
    %vm620 = vweird.f32 %v614
    %vm621 = vmor %vm619, %vm620
    %v622 = vsel %vm621, %v614, %v618
    %v623 = vand.u32 2147483647, %v593
    %vm624 = vcmp.eq.f32.partialorder %v623, 8.507059e+37
    %v625 = vand.u32 %v593, 2147483648
    %v626 = vor.u32 1.1754944e-38, %v625
    %v627 = vsel %vm624, %v626, %v622
    %v628 = vrcp.pop %v596
    %v629 = vmul.f32 %v596, %v628
    %v630 = vsub.f32 1.0, %v629
    %v631 = vmul.f32 %v628, %v630
    %v632 = vadd.f32 %v628, %v631
    %vm633 = vweird.f32 %v596
    %vm634 = vweird.f32 %v628
    %vm635 = vmor %vm633, %vm634
    %v636 = vsel %vm635, %v628, %v632
    %v637 = vand.u32 2147483647, %v596
    %vm638 = vcmp.eq.f32.partialorder %v637, 8.507059e+37
    %v639 = vand.u32 %v596, 2147483648
    %v640 = vor.u32 1.1754944e-38, %v639
    %v641 = vsel %vm638, %v640, %v636
    %v642 = vrcp.pop %v599
    %v643 = vmul.f32 %v599, %v642
    %v644 = vsub.f32 1.0, %v643
    %v645 = vmul.f32 %v642, %v644
    %v646 = vadd.f32 %v642, %v645
    %vm647 = vweird.f32 %v599
    %vm648 = vweird.f32 %v642
    %vm649 = vmor %vm647, %vm648
    %v650 = vsel %vm649, %v642, %v646
    %v651 = vand.u32 2147483647, %v599
    %vm652 = vcmp.eq.f32.partialorder %v651, 8.507059e+37
    %v653 = vand.u32 %v599, 2147483648
    %v654 = vor.u32 1.1754944e-38, %v653
    %v655 = vsel %vm652, %v654, %v650
    %v656 = vmul.f32 %v581, %v613
    %v657 = vmul.f32 %v583, %v627
    %v658 = vmul.f32 %v585, %v641
    %v659 = vmul.f32 %v587, %v655
    %v661 = vsel %vm348, %v656, 0
    %v664 = vsel %vm348, %v657, 0
    %v667 = vsel %vm348, %v658, 0
    %v670 = vsel %vm348, %v659, 0
    %672 = vmatpush.msra.mxu0 0.0
    %673 = vmatpush.msra.mxu0 0.0
    %674 = vmatpush.msra.mxu0 0.0
    %675 = vmatpush.msra.mxu0 0.0
    %676 = vmatpush.msra.mxu0 0.0
    %677 = vmatpush.msra.mxu0 0.0
    %678 = vmatpush.msra.mxu0 0.0
    %679 = vmatpush.msra.mxu0 0.0
    %680 = vmatpush.msra.mxu0 0.0
    %681 = vmatpush.msra.mxu0 0.0
    %682 = vmatpush.msra.mxu0 0.0
    %683 = vmatpush.msra.mxu0 0.0
    %684 = vmatpush.msra.mxu0 %v255
    %685 = vmatpush.msra.mxu0 %v252
    %686 = vmatpush.msra.mxu0 %v249
    %687 = vmatpush.msra.mxu0 %v246
    %688 = vmatmul.f32.gmra.mxu0 %v661
    %v689 = vpop.f32.mrf.mxu0
    %v690 = vadd.f32 0.0, %v689
    %691 = vmatmul.f32.gmra.mxu0 %v664
    %v692 = vpop.f32.mrf.mxu0
    %v693 = vadd.f32 0.0, %v692
    %694 = vmatmul.f32.gmra.mxu0 %v667
    %v695 = vpop.f32.mrf.mxu0
    %v696 = vadd.f32 0.0, %v695
    %697 = vmatmul.f32.gmra.mxu0 %v670
    %v698 = vpop.f32.mrf.mxu0
    %v699 = vadd.f32 0.0, %v698
    %700 = vdwg.mxu0
    %s701 = scalar_lea.vmem %s10, 8
    %v702 = vld [vmem:[%s701] sm:$0xff]
    %v704 = vsel %vm181, %v690, 0
    %v707 = vsel %vm181, %v693, 0
    %v710 = vsel %vm181, %v696, 0
    %v713 = vsel %vm181, %v699, 0
    %715 = vmatpush.msra.mxu0 0.0
    %716 = vmatpush.msra.mxu0 0.0
    %717 = vmatpush.msra.mxu0 0.0
    %718 = vmatpush.msra.mxu0 0.0
    %719 = vmatpush.msra.mxu0 0.0
    %720 = vmatpush.msra.mxu0 0.0
    %721 = vmatpush.msra.mxu0 0.0
    %722 = vmatpush.msra.mxu0 0.0
    %723 = vmatpush.msra.mxu0 0.0
    %724 = vmatpush.msra.mxu0 0.0
    %725 = vmatpush.msra.mxu0 0.0
    %726 = vmatpush.msra.mxu0 0.0
    %727 = vmatpush.msra.mxu0 0.0
    %728 = vmatpush.msra.mxu0 0.0
    %729 = vmatpush.msra.mxu0 0.0
    %730 = vmatpush.msra.mxu0 %v702
    %731 = vmatmul.f32.gmra.mxu0 %v704
    %v732 = vpop.f32.mrf.mxu0
    %v733 = vadd.f32 0.0, %v732
    %734 = vmatmul.f32.gmra.mxu0 %v707
    %v735 = vpop.f32.mrf.mxu0
    %v736 = vadd.f32 0.0, %v735
    %737 = vmatmul.f32.gmra.mxu0 %v710
    %v738 = vpop.f32.mrf.mxu0
    %v739 = vadd.f32 0.0, %v738
    %740 = vmatmul.f32.gmra.mxu0 %v713
    %v741 = vpop.f32.mrf.mxu0
    %v742 = vadd.f32 0.0, %v741
    %743 = vdwg.mxu0
    %v745 = vsel %vm181, %v475, 0
    %v748 = vsel %vm181, %v478, 0
    %v751 = vsel %vm181, %v481, 0
    %v754 = vsel %vm181, %v484, 0
    %756 = vmatpush.msra.mxu0 0.0
    %757 = vmatpush.msra.mxu0 0.0
    %758 = vmatpush.msra.mxu0 0.0
    %759 = vmatpush.msra.mxu0 0.0
    %760 = vmatpush.msra.mxu0 0.0
    %761 = vmatpush.msra.mxu0 0.0
    %762 = vmatpush.msra.mxu0 0.0
    %763 = vmatpush.msra.mxu0 0.0
    %764 = vmatpush.msra.mxu0 0.0
    %765 = vmatpush.msra.mxu0 0.0
    %766 = vmatpush.msra.mxu0 0.0
    %767 = vmatpush.msra.mxu0 0.0
    %768 = vmatpush.msra.mxu0 0.0
    %769 = vmatpush.msra.mxu0 0.0
    %770 = vmatpush.msra.mxu0 0.0
    %771 = vmatpush.msra.mxu0 %v486
    %772 = vmatmul.f32.gmra.mxu0 %v745
    %v773 = vpop.f32.mrf.mxu0
    %v774 = vadd.f32 %v733, %v773
    %775 = vmatmul.f32.gmra.mxu0 %v748
    %v776 = vpop.f32.mrf.mxu0
    %v777 = vadd.f32 %v736, %v776
    %778 = vmatmul.f32.gmra.mxu0 %v751
    %v779 = vpop.f32.mrf.mxu0
    %v780 = vadd.f32 %v739, %v779
    %781 = vmatmul.f32.gmra.mxu0 %v754
    %v782 = vpop.f32.mrf.mxu0
    %v783 = vadd.f32 %v742, %v782
    %784 = vdwg.mxu0
    %v785 = vld [vmem:[%s12] sm:$0x3]
    %v786 = vld [vmem:[%s11] sm:$0xff]
    %v787 = vld [vmem:[%s11 + $0x8] sm:$0xff]
    %v788 = vld [vmem:[%s11 + $0x10] sm:$0xff]
    %v789 = vld [vmem:[%s11 + $0x18] sm:$0xff]
    %v790 = vmul.f32 %v774, %v786
    %v791 = vmul.f32 %v777, %v787
    %v792 = vmul.f32 %v780, %v788
    %v793 = vmul.f32 %v783, %v789
    %v795 = vsel %vm348, %v785, 0
    %797 = vmatpush.msra.mxu0 0.0
    %798 = vmatpush.msra.mxu0 0.0
    %799 = vmatpush.msra.mxu0 0.0
    %800 = vmatpush.msra.mxu0 0.0
    %801 = vmatpush.msra.mxu0 0.0
    %802 = vmatpush.msra.mxu0 0.0
    %803 = vmatpush.msra.mxu0 0.0
    %804 = vmatpush.msra.mxu0 0.0
    %805 = vmatpush.msra.mxu0 0.0
    %806 = vmatpush.msra.mxu0 0.0
    %807 = vmatpush.msra.mxu0 0.0
    %808 = vmatpush.msra.mxu0 0.0
    %809 = vmatpush.msra.mxu0 %v793
    %810 = vmatpush.msra.mxu0 %v792
    %811 = vmatpush.msra.mxu0 %v791
    %812 = vmatpush.msra.mxu0 %v790
    %813 = vmatmul.f32.gmra.mxu0 %v795
    %v814 = vpop.f32.mrf.mxu0
    %v815 = vadd.f32 0.0, %v814
    %816 = vdwg.mxu0
    %v817 = vld [vmem:[%s13] sm:$0xff]
    %v818 = vld [vmem:[%s13 + $0x8] sm:$0xff]
    %v819 = vld [vmem:[%s13 + $0x10] sm:$0xff]
    %v820 = vld [vmem:[%s13 + $0x18] sm:$0xff]
    %v821 = vld [vmem:[%s13 + $0x20] sm:$0xff]
    %v822 = vld [vmem:[%s13 + $0x28] sm:$0xff]
    %v823 = vld [vmem:[%s13 + $0x30] sm:$0xff]
    %v824 = vld [vmem:[%s13 + $0x38] sm:$0xff]
    %v825 = vld [vmem:[%s13 + $0x40] sm:$0xff]
    %v826 = vld [vmem:[%s13 + $0x48] sm:$0xff]
    %v827 = vld [vmem:[%s13 + $0x50] sm:$0xff]
    %v828 = vld [vmem:[%s13 + $0x58] sm:$0xff]
    %v829 = vld [vmem:[%s13 + $0x60] sm:$0xff]
    %v830 = vld [vmem:[%s13 + $0x68] sm:$0xff]
    %v831 = vld [vmem:[%s13 + $0x70] sm:$0xff]
    %v832 = vld [vmem:[%s13 + $0x78] sm:$0xff]
    %v833 = vld [vmem:[%s13 + $0x80] sm:$0xff]
    %v834 = vld [vmem:[%s13 + $0x88] sm:$0xff]
    %v835 = vld [vmem:[%s13 + $0x90] sm:$0xff]
    %v836 = vld [vmem:[%s13 + $0x98] sm:$0xff]
    %v837 = vld [vmem:[%s13 + $0xa0] sm:$0xff]
    %v838 = vld [vmem:[%s13 + $0xa8] sm:$0xff]
    %v839 = vld [vmem:[%s13 + $0xb0] sm:$0xff]
    %v840 = vld [vmem:[%s13 + $0xb8] sm:$0xff]
    %v841 = vld [vmem:[%s13 + $0xc0] sm:$0xff]
    %v842 = vld [vmem:[%s13 + $0xc8] sm:$0xff]
    %v843 = vld [vmem:[%s13 + $0xd0] sm:$0xff]
    %v844 = vld [vmem:[%s13 + $0xd8] sm:$0xff]
    %v845 = vld [vmem:[%s13 + $0xe0] sm:$0xff]
    %v846 = vld [vmem:[%s13 + $0xe8] sm:$0xff]
    %v847 = vld [vmem:[%s13 + $0xf0] sm:$0xff]
    %v848 = vld [vmem:[%s13 + $0xf8] sm:$0xff]
    %v849 = vld [vmem:[%s13 + $0x100] sm:$0xff]
    %v850 = vld [vmem:[%s13 + $0x108] sm:$0xff]
    %v851 = vld [vmem:[%s13 + $0x110] sm:$0xff]
    %v852 = vld [vmem:[%s13 + $0x118] sm:$0xff]
    %v853 = vld [vmem:[%s13 + $0x120] sm:$0xff]
    %v854 = vld [vmem:[%s13 + $0x128] sm:$0xff]
    %v855 = vld [vmem:[%s13 + $0x130] sm:$0xff]
    %v856 = vld [vmem:[%s13 + $0x138] sm:$0xff]
    %v857 = vld [vmem:[%s13 + $0x140] sm:$0xff]
    %v858 = vld [vmem:[%s13 + $0x148] sm:$0xff]
    %v859 = vld [vmem:[%s13 + $0x150] sm:$0xff]
    %v860 = vld [vmem:[%s13 + $0x158] sm:$0xff]
    %v861 = vld [vmem:[%s13 + $0x160] sm:$0xff]
    %v862 = vld [vmem:[%s13 + $0x168] sm:$0xff]
    %v863 = vld [vmem:[%s13 + $0x170] sm:$0xff]
    %v864 = vld [vmem:[%s13 + $0x178] sm:$0xff]
    %v865 = vld [vmem:[%s14] sm:$0x7]
    %v867 = vperm.slane %v865, 0
    %v868 = vperm.slane %v865, 1
    %v869 = vperm.slane %v865, 2
    %873 = vmatpush.msra.mxu0 %v862
    %874 = vmatpush.msra.mxu0 %v859
    %875 = vmatpush.msra.mxu0 %v856
    %876 = vmatpush.msra.mxu0 %v853
    %877 = vmatpush.msra.mxu0 %v850
    %878 = vmatpush.msra.mxu0 %v847
    %879 = vmatpush.msra.mxu0 %v844
    %880 = vmatpush.msra.mxu0 %v841
    %881 = vmatpush.msra.mxu0 %v838
    %882 = vmatpush.msra.mxu0 %v835
    %883 = vmatpush.msra.mxu0 %v832
    %884 = vmatpush.msra.mxu0 %v829
    %885 = vmatpush.msra.mxu0 %v826
    %886 = vmatpush.msra.mxu0 %v823
    %887 = vmatpush.msra.mxu0 %v820
    %888 = vmatpush.msra.mxu0 %v817
    %889 = vmatmul.f32.gmra.mxu0 %v815
    %v890 = vpop.f32.mrf.mxu0
    %v891 = vadd.f32 %v867, %v890
    %892 = vdwg.mxu0
    %893 = vmatpush.msra.mxu0 %v863
    %894 = vmatpush.msra.mxu0 %v860
    %895 = vmatpush.msra.mxu0 %v857
    %896 = vmatpush.msra.mxu0 %v854
    %897 = vmatpush.msra.mxu0 %v851
    %898 = vmatpush.msra.mxu0 %v848
    %899 = vmatpush.msra.mxu0 %v845
    %900 = vmatpush.msra.mxu0 %v842
    %901 = vmatpush.msra.mxu0 %v839
    %902 = vmatpush.msra.mxu0 %v836
    %903 = vmatpush.msra.mxu0 %v833
    %904 = vmatpush.msra.mxu0 %v830
    %905 = vmatpush.msra.mxu0 %v827
    %906 = vmatpush.msra.mxu0 %v824
    %907 = vmatpush.msra.mxu0 %v821
    %908 = vmatpush.msra.mxu0 %v818
    %909 = vmatmul.f32.gmra.mxu0 %v815
    %v910 = vpop.f32.mrf.mxu0
    %v911 = vadd.f32 %v868, %v910
    %912 = vdwg.mxu0
    %913 = vmatpush.msra.mxu0 %v864
    %914 = vmatpush.msra.mxu0 %v861
    %915 = vmatpush.msra.mxu0 %v858
    %916 = vmatpush.msra.mxu0 %v855
    %917 = vmatpush.msra.mxu0 %v852
    %918 = vmatpush.msra.mxu0 %v849
    %919 = vmatpush.msra.mxu0 %v846
    %920 = vmatpush.msra.mxu0 %v843
    %921 = vmatpush.msra.mxu0 %v840
    %922 = vmatpush.msra.mxu0 %v837
    %923 = vmatpush.msra.mxu0 %v834
    %924 = vmatpush.msra.mxu0 %v831
    %925 = vmatpush.msra.mxu0 %v828
    %926 = vmatpush.msra.mxu0 %v825
    %927 = vmatpush.msra.mxu0 %v822
    %928 = vmatpush.msra.mxu0 %v819
    %929 = vmatmul.f32.gmra.mxu0 %v815
    %v930 = vpop.f32.mrf.mxu0
    %v931 = vadd.f32 %v869, %v930
    %932 = vdwg.mxu0
    %v933 = vmax.f32 %v891, 0.0
    %v934 = vmax.f32 %v911, 0.0
    %v935 = vmax.f32 %v931, 0.0
    %v936 = vld [vmem:[%s15] sm:$0xff]
    %v937 = vld [vmem:[%s15 + $0x8] sm:$0xff]
    %v938 = vld [vmem:[%s15 + $0x10] sm:$0xff]
    %v939 = vld [vmem:[%s15 + $0x18] sm:$0xff]
    %v940 = vld [vmem:[%s15 + $0x20] sm:$0xff]
    %v941 = vld [vmem:[%s15 + $0x28] sm:$0xff]
    %v942 = vld [vmem:[%s15 + $0x30] sm:$0xff]
    %v943 = vld [vmem:[%s15 + $0x38] sm:$0xff]
    %v944 = vld [vmem:[%s15 + $0x40] sm:$0xff]
    %v945 = vld [vmem:[%s15 + $0x48] sm:$0xff]
    %v946 = vld [vmem:[%s15 + $0x50] sm:$0xff]
    %v947 = vld [vmem:[%s15 + $0x58] sm:$0xff]
    %v948 = vld [vmem:[%s15 + $0x60] sm:$0xff]
    %v949 = vld [vmem:[%s15 + $0x68] sm:$0xff]
    %v950 = vld [vmem:[%s15 + $0x70] sm:$0xff]
    %v951 = vld [vmem:[%s15 + $0x78] sm:$0xff]
    %v952 = vld [vmem:[%s15 + $0x80] sm:$0xff]
    %v953 = vld [vmem:[%s15 + $0x88] sm:$0xff]
    %v954 = vld [vmem:[%s15 + $0x90] sm:$0xff]
    %v955 = vld [vmem:[%s15 + $0x98] sm:$0xff]
    %v956 = vld [vmem:[%s15 + $0xa0] sm:$0xff]
    %v957 = vld [vmem:[%s15 + $0xa8] sm:$0xff]
    %v958 = vld [vmem:[%s15 + $0xb0] sm:$0xff]
    %v959 = vld [vmem:[%s15 + $0xb8] sm:$0xff]
    %v960 = vld [vmem:[%s15 + $0xc0] sm:$0xff]
    %v961 = vld [vmem:[%s15 + $0xc8] sm:$0xff]
    %v962 = vld [vmem:[%s15 + $0xd0] sm:$0xff]
    %v963 = vld [vmem:[%s15 + $0xd8] sm:$0xff]
    %v964 = vld [vmem:[%s15 + $0xe0] sm:$0xff]
    %v965 = vld [vmem:[%s15 + $0xe8] sm:$0xff]
    %v966 = vld [vmem:[%s15 + $0xf0] sm:$0xff]
    %v967 = vld [vmem:[%s15 + $0xf8] sm:$0xff]
    %v968 = vld [vmem:[%s15 + $0x100] sm:$0xff]
    %v969 = vld [vmem:[%s15 + $0x108] sm:$0xff]
    %v970 = vld [vmem:[%s15 + $0x110] sm:$0xff]
    %v971 = vld [vmem:[%s15 + $0x118] sm:$0xff]
    %v972 = vld [vmem:[%s15 + $0x120] sm:$0xff]
    %v973 = vld [vmem:[%s15 + $0x128] sm:$0xf]
    %v974 = vld [vmem:[%s16] sm:$0x1]
    %v976 = vperm.slane %v974, 0
    %vm978 = vcmask 359424
    %v980 = vsel %vm978, %v935, 0
    %v983 = vsel %vm81, %v973, 0
    %985 = vmatpush.msra.mxu0 %v951
    %986 = vmatpush.msra.mxu0 %v950
    %987 = vmatpush.msra.mxu0 %v949
    %988 = vmatpush.msra.mxu0 %v948
    %989 = vmatpush.msra.mxu0 %v947
    %990 = vmatpush.msra.mxu0 %v946
    %991 = vmatpush.msra.mxu0 %v945
    %992 = vmatpush.msra.mxu0 %v944
    %993 = vmatpush.msra.mxu0 %v943
    %994 = vmatpush.msra.mxu0 %v942
    %995 = vmatpush.msra.mxu0 %v941
    %996 = vmatpush.msra.mxu0 %v940
    %997 = vmatpush.msra.mxu0 %v939
    %998 = vmatpush.msra.mxu0 %v938
    %999 = vmatpush.msra.mxu0 %v937
    %1000 = vmatpush.msra.mxu0 %v936
    %1001 = vmatmul.f32.gmra.mxu0 %v933
    %v1002 = vpop.f32.mrf.mxu0
    %v1003 = vadd.f32 %v976, %v1002
    %1004 = vdwg.mxu0
    %1005 = vmatpush.msra.mxu0 %v967
    %1006 = vmatpush.msra.mxu0 %v966
    %1007 = vmatpush.msra.mxu0 %v965
    %1008 = vmatpush.msra.mxu0 %v964
    %1009 = vmatpush.msra.mxu0 %v963
    %1010 = vmatpush.msra.mxu0 %v962
    %1011 = vmatpush.msra.mxu0 %v961
    %1012 = vmatpush.msra.mxu0 %v960
    %1013 = vmatpush.msra.mxu0 %v959
    %1014 = vmatpush.msra.mxu0 %v958
    %1015 = vmatpush.msra.mxu0 %v957
    %1016 = vmatpush.msra.mxu0 %v956
    %1017 = vmatpush.msra.mxu0 %v955
    %1018 = vmatpush.msra.mxu0 %v954
    %1019 = vmatpush.msra.mxu0 %v953
    %1020 = vmatpush.msra.mxu0 %v952
    %1021 = vmatmul.f32.gmra.mxu0 %v934
    %v1022 = vpop.f32.mrf.mxu0
    %v1023 = vadd.f32 %v1003, %v1022
    %1024 = vdwg.mxu0
    %1025 = vmatpush.msra.mxu0 0.0
    %1026 = vmatpush.msra.mxu0 0.0
    %1027 = vmatpush.msra.mxu0 0.0
    %1028 = vmatpush.msra.mxu0 0.0
    %1029 = vmatpush.msra.mxu0 0.0
    %1030 = vmatpush.msra.mxu0 0.0
    %1031 = vmatpush.msra.mxu0 0.0
    %1032 = vmatpush.msra.mxu0 0.0
    %1033 = vmatpush.msra.mxu0 0.0
    %1034 = vmatpush.msra.mxu0 0.0
    %1035 = vmatpush.msra.mxu0 %v983
    %1036 = vmatpush.msra.mxu0 %v972
    %1037 = vmatpush.msra.mxu0 %v971
    %1038 = vmatpush.msra.mxu0 %v970
    %1039 = vmatpush.msra.mxu0 %v969
    %1040 = vmatpush.msra.mxu0 %v968
    %1041 = vmatmul.f32.gmra.mxu0 %v980
    %v1042 = vpop.f32.mrf.mxu0
    %v1043 = vadd.f32 %v1023, %v1042
    %1044 = vdwg.mxu0
    %v1045 = vmax.f32 %v1043, 0.0
    %v1046 = vld [vmem:[%s17] sm:$0xff]
    %v1047 = vld [vmem:[%s17 + $0x8] sm:$0xff]
    %v1048 = vld [vmem:[%s17 + $0x10] sm:$0xff]
    %v1049 = vld [vmem:[%s17 + $0x18] sm:$0xff]
    %v1050 = vld [vmem:[%s17 + $0x20] sm:$0xff]
    %v1051 = vld [vmem:[%s17 + $0x28] sm:$0xff]
    %v1052 = vld [vmem:[%s17 + $0x30] sm:$0xff]
    %v1053 = vld [vmem:[%s17 + $0x38] sm:$0xff]
    %v1054 = vld [vmem:[%s17 + $0x40] sm:$0xff]
    %v1055 = vld [vmem:[%s17 + $0x48] sm:$0xff]
    %v1056 = vld [vmem:[%s17 + $0x50] sm:$0xff]
    %v1057 = vld [vmem:[%s17 + $0x58] sm:$0xff]
    %v1058 = vld [vmem:[%s17 + $0x60] sm:$0xf]
    %v1059 = vld [vmem:[%s18] sm:$0x1]
    %v1061 = vperm.slane %v1059, 0
    %vm1063 = vcmask 818176
    %v1065 = vsel %vm1063, %v1045, 0
    %v1068 = vsel %vm81, %v1058, 0
    %1070 = vmatpush.msra.mxu0 0.0
    %1071 = vmatpush.msra.mxu0 0.0
    %1072 = vmatpush.msra.mxu0 0.0
    %1073 = vmatpush.msra.mxu0 %v1068
    %1074 = vmatpush.msra.mxu0 %v1057
    %1075 = vmatpush.msra.mxu0 %v1056
    %1076 = vmatpush.msra.mxu0 %v1055
    %1077 = vmatpush.msra.mxu0 %v1054
    %1078 = vmatpush.msra.mxu0 %v1053
    %1079 = vmatpush.msra.mxu0 %v1052
    %1080 = vmatpush.msra.mxu0 %v1051
    %1081 = vmatpush.msra.mxu0 %v1050
    %1082 = vmatpush.msra.mxu0 %v1049
    %1083 = vmatpush.msra.mxu0 %v1048
    %1084 = vmatpush.msra.mxu0 %v1047
    %1085 = vmatpush.msra.mxu0 %v1046
    %1086 = vmatmul.f32.gmra.mxu0 %v1065
    %v1087 = vpop.f32.mrf.mxu0
    %v1088 = vadd.f32 %v1061, %v1087
    %1089 = vdwg.mxu0
    %1090 = vst [vmem:[#allocation2] sm:$0x3] %v1088
    // Predicated region
    $region78: #{attention_cnn_forward.1} parent=1 // pred_check
      _
    $region79: #{attention_cnn_forward.1} parent=1 // pred_check_branch
      %1092 = sbr.rel (0) target = $region81
    $region80: #{attention_cnn_forward.1} parent=1 // pred_region
      %1094 = vsyncadd [#allocation3], 0
      %s1096 = sshll.u32 [#allocation2], 4
      %s1097 = int_to_ptr.vmem [resolvable:$true] %s1096
      %s1098 = sshll.u32 %s19, 4
      %s1099 = int_to_ptr.hbm [resolvable:$true] %s1098
      %1101 = dma.vmem_to_hbm [thread:$0]  %s1097, 32, %s1099, [#allocation3]
    $region81: #{attention_cnn_forward.1} parent=1 // pred_fallthru
      _
    // Predicated region
    $region82: #{attention_cnn_forward.1} parent=1 // pred_check
      _
    $region83: #{attention_cnn_forward.1} parent=1 // pred_check_branch
      %1103 = sbr.rel (0) target = $region85
    $region84: #{attention_cnn_forward.1} parent=1 // pred_region
      %1105 = dma.done [#allocation3], 32
    $region85: #{attention_cnn_forward.1} parent=1 // pred_fallthru
      _
    %1106 = vsyncpa [#allocation3], 1

</llo_original>
